<compile_context>
chip_gen: v7x
topology: tpu7x:2x2x1
jax: 0.10.0
libtpu: 0.0.40
codegen_flags: <defaults>
</compile_context>

<pallas_src>
import functools

import jax
import jax.numpy as jnp
from jax.experimental import pallas as pl
from jax.experimental.pallas import tpu as pltpu

_LANE = 128


def _round_up(x, m):
    return (x + m - 1) // m * m


def _silu(x):
    # silu(x) = x * sigmoid(x) = 0.5 * x * (tanh(x/2) + 1): single EUP op.
    return 0.5 * x * (jnp.tanh(0.5 * x) + 1.0)


# --------------------------------------------------------------------------
# Kernels
# --------------------------------------------------------------------------
def _resnet_resident_kernel(x_ref, win_ref, bin_ref, w1_ref, b1_ref, w2_ref,
                            b2_ref, wout_ref, bout_ref, o_ref, *, n_blocks):
    """All weights resident in VMEM; one grid step = one batch tile."""
    h = jnp.dot(x_ref[...], win_ref[...],
                preferred_element_type=jnp.float32) + bin_ref[...]

    def block(blk, h):
        a = jnp.dot(_silu(h).astype(jnp.bfloat16), w1_ref[blk],
                    preferred_element_type=jnp.float32) + b1_ref[blk]
        b = jnp.dot(_silu(a).astype(jnp.bfloat16), w2_ref[blk],
                    preferred_element_type=jnp.float32) + b2_ref[blk]
        return h + b          # alpha already folded into w2 / b2

    if n_blocks <= 8:
        # Short fixed trip count: static unroll gives full scheduler visibility.
        for blk in range(n_blocks):
            h = block(blk, h)
    else:
        # Deep nets: rolled loop bounds vreg live ranges; unroll=2 lets the
        # packer overlap fc2 MXU drain with the next block's silu EUP work.
        h = jax.lax.fori_loop(0, n_blocks, block, h, unroll=2)

    out = jnp.dot(h.astype(jnp.bfloat16), wout_ref[...],
                  preferred_element_type=jnp.float32) + bout_ref[...]
    o_ref[...] = out.astype(o_ref.dtype)


def _resnet_stream_kernel(x_ref, win_ref, bin_ref, w1_ref, b1_ref, w2_ref,
                          b2_ref, wout_ref, bout_ref, o_ref, h_ref):
    """Weights streamed one ResBlock per grid step; residual h in VMEM scratch."""
    blk = pl.program_id(1)

    @pl.when(blk == 0)
    def _():
        h_ref[...] = jnp.dot(x_ref[...], win_ref[...],
                             preferred_element_type=jnp.float32) + bin_ref[...]

    h = h_ref[...]
    a = jnp.dot(_silu(h).astype(jnp.bfloat16), w1_ref[0],
                preferred_element_type=jnp.float32) + b1_ref[0]
    b = jnp.dot(_silu(a).astype(jnp.bfloat16), w2_ref[0],
                preferred_element_type=jnp.float32) + b2_ref[0]
    h_ref[...] = h + b        # alpha already folded into w2 / b2

    @pl.when(blk == pl.num_programs(1) - 1)
    def _():
        out = jnp.dot(h_ref[...].astype(jnp.bfloat16), wout_ref[...],
                      preferred_element_type=jnp.float32) + bout_ref[...]
        o_ref[...] = out.astype(o_ref.dtype)


# --------------------------------------------------------------------------
# Host-side helpers
# --------------------------------------------------------------------------
def _vmem_budget_bytes():
    try:
        cap = int(pltpu.get_tpu_info().vmem_capacity_bytes)
    except Exception:
        cap = 64 * 2**20          # conservative fallback (v7x per-core VMEM)
    return int(0.8 * cap)


def _resident_vmem_bytes(tm, n_in_p, width_p, bneck_p, n_out_p, n_blocks):
    w = 2 * (n_in_p * width_p + n_blocks * width_p * bneck_p
             + n_blocks * bneck_p * width_p + width_p * n_out_p)         # bf16, 1x buffered
    b = 4 * (width_p + n_blocks * bneck_p + n_blocks * width_p + n_out_p)
    io = 2 * tm * n_in_p * 2 + 2 * tm * n_out_p * 4                      # double-buffered tiles
    live = 4 * tm * width_p * 4                                          # f32 temporaries
    return w + b + io + live


def _streamed_vmem_bytes(tm, n_in_p, width_p, bneck_p, n_out_p):
    per_blk_w = 2 * 2 * (width_p * bneck_p + bneck_p * width_p)          # double-buffered bf16
    per_blk_b = 2 * 4 * (bneck_p + width_p)
    fixed_w = 2 * (n_in_p * width_p + width_p * n_out_p)                 # single-buffered
    fixed_b = 4 * (width_p + n_out_p)
    io = 2 * tm * n_in_p * 2 + 2 * tm * n_out_p * 4
    scratch = tm * width_p * 4
    live = 4 * tm * width_p * 4
    return per_blk_w + per_blk_b + fixed_w + fixed_b + io + scratch + live


def prepare_params(params):
    """One-time weight prep: pad to lane multiples, fold alpha into fc2, cast to bf16."""
    win, b_in = params["win"], params["bin"]
    w1, b1 = params["w1"], params["b1"]
    w2, b2 = params["w2"], params["b2"]
    wout, bout = params["wout"], params["bout"]
    alpha = params["alpha"].astype(jnp.float32)

    n_blocks, width, bneck = w1.shape
    n_in = win.shape[0]
    n_out = wout.shape[1]
    assert n_blocks >= 1

    n_in_p = _round_up(n_in, _LANE)
    width_p = _round_up(width, _LANE)
    bneck_p = _round_up(bneck, _LANE)
    n_out_p = _round_up(n_out, _LANE)

    # h + alpha*(silu(a) @ w2 + b2) == h + silu(a) @ (alpha*w2) + alpha*b2
    w2a = w2 * alpha[:, None, None]
    b2a = b2 * alpha[:, None]

    def pad_to(a, shape):
        return jnp.pad(a, [(0, s - d) for d, s in zip(a.shape, shape)])

    bf16 = jnp.bfloat16
    return {
        "win": pad_to(win, (n_in_p, width_p)).astype(bf16),
        "bin": pad_to(b_in, (width_p,)).reshape(1, width_p).astype(jnp.float32),
        "w1": pad_to(w1, (n_blocks, width_p, bneck_p)).astype(bf16),
        "b1": pad_to(b1, (n_blocks, bneck_p)).reshape(n_blocks, 1, bneck_p).astype(jnp.float32),
        "w2": pad_to(w2a, (n_blocks, bneck_p, width_p)).astype(bf16),
        "b2": pad_to(b2a, (n_blocks, width_p)).reshape(n_blocks, 1, width_p).astype(jnp.float32),
        "wout": pad_to(wout, (width_p, n_out_p)).astype(bf16),
        "bout": pad_to(bout, (n_out_p,)).reshape(1, n_out_p).astype(jnp.float32),
        "dims": (n_in, n_out, n_blocks, n_in_p, width_p, bneck_p, n_out_p),
    }


def resnet_forward(x, prepared, *, tm=None, force_stream=False):
    """x: [B, n_in] float32. prepared: output of prepare_params()."""
    n_in, n_out, n_blocks, n_in_p, width_p, bneck_p, n_out_p = prepared["dims"]
    B = x.shape[0]
    assert x.shape[1] == n_in

    if tm is None:
        tm = 256 if B >= 512 else 128   # fill 256-wide MXU rows on big batches
    B_p = _round_up(B, tm)

    x_p = jnp.pad(x, ((0, B_p - B), (0, n_in_p - n_in))).astype(jnp.bfloat16)

    budget = _vmem_budget_bytes()
    resident_bytes = _resident_vmem_bytes(tm, n_in_p, width_p, bneck_p, n_out_p, n_blocks)
    use_stream = force_stream or (resident_bytes > budget)

    args = (x_p, prepared["win"], prepared["bin"], prepared["w1"], prepared["b1"],
            prepared["w2"], prepared["b2"], prepared["wout"], prepared["bout"])

    one_buf = pl.Buffered(1)   # grid-invariant operands: no second pipeline buffer

    if not use_stream:
        grid = (B_p // tm,)
        in_specs = [
            pl.BlockSpec((tm, n_in_p), lambda i: (i, 0)),
            pl.BlockSpec((n_in_p, width_p), lambda i: (0, 0), pipeline_mode=one_buf),
            pl.BlockSpec((1, width_p), lambda i: (0, 0), pipeline_mode=one_buf),
            pl.BlockSpec((n_blocks, width_p, bneck_p), lambda i: (0, 0, 0), pipeline_mode=one_buf),
            pl.BlockSpec((n_blocks, 1, bneck_p), lambda i: (0, 0, 0), pipeline_mode=one_buf),
            pl.BlockSpec((n_blocks, bneck_p, width_p), lambda i: (0, 0, 0), pipeline_mode=one_buf),
            pl.BlockSpec((n_blocks, 1, width_p), lambda i: (0, 0, 0), pipeline_mode=one_buf),
            pl.BlockSpec((width_p, n_out_p), lambda i: (0, 0), pipeline_mode=one_buf),
            pl.BlockSpec((1, n_out_p), lambda i: (0, 0), pipeline_mode=one_buf),
        ]
        out_specs = pl.BlockSpec((tm, n_out_p), lambda i: (i, 0))
        kernel = functools.partial(_resnet_resident_kernel, n_blocks=n_blocks)
        scratch = []
        semantics = ("parallel",)
        vmem_needed = resident_bytes
    else:
        # Stream one ResBlock's weights per inner grid step; h lives in scratch.
        grid = (B_p // tm, n_blocks)
        in_specs = [
            pl.BlockSpec((tm, n_in_p), lambda i, k: (i, 0)),
            pl.BlockSpec((n_in_p, width_p), lambda i, k: (0, 0), pipeline_mode=one_buf),
            pl.BlockSpec((1, width_p), lambda i, k: (0, 0), pipeline_mode=one_buf),
            pl.BlockSpec((1, width_p, bneck_p), lambda i, k: (k, 0, 0)),
            pl.BlockSpec((1, 1, bneck_p), lambda i, k: (k, 0, 0)),
            pl.BlockSpec((1, bneck_p, width_p), lambda i, k: (k, 0, 0)),
            pl.BlockSpec((1, 1, width_p), lambda i, k: (k, 0, 0)),
            pl.BlockSpec((width_p, n_out_p), lambda i, k: (0, 0), pipeline_mode=one_buf),
            pl.BlockSpec((1, n_out_p), lambda i, k: (0, 0), pipeline_mode=one_buf),
        ]
        out_specs = pl.BlockSpec((tm, n_out_p), lambda i, k: (i, 0))
        kernel = _resnet_stream_kernel
        scratch = [pltpu.VMEM((tm, width_p), jnp.float32)]
        semantics = ("parallel", "arbitrary")
        vmem_needed = _streamed_vmem_bytes(tm, n_in_p, width_p, bneck_p, n_out_p)

    vmem_limit = int(min(budget, max(2 * vmem_needed, 32 * 2**20)))

    out_p = pl.pallas_call(
        kernel,
        out_shape=jax.ShapeDtypeStruct((B_p, n_out_p), jnp.float32),
        grid_spec=pltpu.PrefetchScalarGridSpec(
            num_scalar_prefetch=0,
            grid=grid,
            in_specs=in_specs,
            out_specs=out_specs,
            scratch_shapes=scratch),
        compiler_params=pltpu.CompilerParams(
            dimension_semantics=semantics,
            vmem_limit_bytes=vmem_limit),
    )(*args)

    return out_p[:B, :n_out]


# --------------------------------------------------------------------------
# Reference / test harness
# --------------------------------------------------------------------------
def init_params(key, n_in, n_out, width, bottleneck, depth):
    assert depth % 2 == 0
    n_blocks = depth // 2 - 1
    keys = jax.random.split(key, 8)
    s = 0.1
    return {
        "win": s * jax.random.normal(keys[0], (n_in, width), jnp.float32),
        "bin": s * jax.random.normal(keys[1], (width,), jnp.float32),
        "w1": s * jax.random.normal(keys[2], (n_blocks, width, bottleneck), jnp.float32),
        "b1": s * jax.random.normal(keys[3], (n_blocks, bottleneck), jnp.float32),
        "w2": s * jax.random.normal(keys[4], (n_blocks, bottleneck, width), jnp.float32),
        "b2": s * jax.random.normal(keys[5], (n_blocks, width), jnp.float32),
        "wout": s * jax.random.normal(keys[6], (width, n_out), jnp.float32),
        "bout": s * jax.random.normal(keys[7], (n_out,), jnp.float32),
        # PyTorch inits alpha to 0; use nonzero values so the residual branch
        # actually contributes in this synthetic test.
        "alpha": 0.5 + 0.1 * jnp.arange(n_blocks, dtype=jnp.float32),
    }


def resnet_reference(x, params):
    """Pure-JAX f32 reference mirroring the PyTorch forward exactly."""
    h = x @ params["win"] + params["bin"]
    n_blocks = params["w1"].shape[0]
    for i in range(n_blocks):
        a = jax.nn.silu(h) @ params["w1"][i] + params["b1"][i]
        b = jax.nn.silu(a) @ params["w2"][i] + params["b2"][i]
        h = h + params["alpha"][i] * b
    return h @ params["wout"] + params["bout"]


if __name__ == "__main__":
    # ResNet(n_in=16, n_out=8, width=32, bottleneck=16, depth=6) -> 2 ResBlocks.
    n_in, n_out, width, bottleneck, depth = 16, 8, 32, 16, 6
    B = 256   # two 128-row batch tiles -> parallel grid axis can use both v7x TCs

    key = jax.random.PRNGKey(0)
    kx, kp = jax.random.split(key)
    x = jax.random.normal(kx, (B, n_in), jnp.float32)
    params = init_params(kp, n_in, n_out, width, bottleneck, depth)

    prepared = prepare_params(params)   # one-time pad/cast/fold
    ref = resnet_reference(x, params)

    # Resident-weights path (default for these small shapes).
    out = jax.block_until_ready(resnet_forward(x, prepared))
    assert out.shape == (B, n_out)
    err = float(jnp.max(jnp.abs(out - ref)))
    assert jnp.allclose(out, ref, atol=3e-2, rtol=3e-2), f"resident mismatch, max abs err={err}"

    # Streamed-weights path (used automatically when the stack exceeds VMEM budget);
    # force it here to validate correctness of the fallback.
    out_s = jax.block_until_ready(resnet_forward(x, prepared, force_stream=True))
    err_s = float(jnp.max(jnp.abs(out_s - ref)))
    assert jnp.allclose(out_s, ref, atol=3e-2, rtol=3e-2), f"streamed mismatch, max abs err={err_s}"

    print("KERNEL_OK")
</pallas_src>

<mosaic_0001>
module attributes {stable_mosaic.version = 11 : i64} {
  func.func @_resnet_resident_kernel(%arg0: i32, %arg1: memref<128x128xbf16, #tpu.memory_space<vmem>>, %arg2: memref<128x128xbf16, #tpu.memory_space<vmem>>, %arg3: memref<1x128xf32, #tpu.memory_space<vmem>>, %arg4: memref<2x128x128xbf16, #tpu.memory_space<vmem>>, %arg5: memref<2x1x128xf32, #tpu.memory_space<vmem>>, %arg6: memref<2x128x128xbf16, #tpu.memory_space<vmem>>, %arg7: memref<2x1x128xf32, #tpu.memory_space<vmem>>, %arg8: memref<128x128xbf16, #tpu.memory_space<vmem>>, %arg9: memref<1x128xf32, #tpu.memory_space<vmem>>, %arg10: memref<128x128xf32, #tpu.memory_space<vmem>>) attributes {dimension_semantics = [#tpu.dimension_semantics<parallel>], iteration_bounds = array<i64: 2>, scalar_prefetch = 0 : i64, scratch_operands = 0 : i64, tpu.core_type = #tpu.core_type<tc>, window_params = [{transform_indices = @transform_0, window_bounds = array<i64: 128, 128>}, {pipeline_mode = #tpu.pipeline_mode<synchronous>, transform_indices = @transform_1, window_bounds = array<i64: 128, 128>}, {pipeline_mode = #tpu.pipeline_mode<synchronous>, transform_indices = @transform_2, window_bounds = array<i64: 1, 128>}, {pipeline_mode = #tpu.pipeline_mode<synchronous>, transform_indices = @transform_3, window_bounds = array<i64: 2, 128, 128>}, {pipeline_mode = #tpu.pipeline_mode<synchronous>, transform_indices = @transform_4, window_bounds = array<i64: 2, 1, 128>}, {pipeline_mode = #tpu.pipeline_mode<synchronous>, transform_indices = @transform_5, window_bounds = array<i64: 2, 128, 128>}, {pipeline_mode = #tpu.pipeline_mode<synchronous>, transform_indices = @transform_6, window_bounds = array<i64: 2, 1, 128>}, {pipeline_mode = #tpu.pipeline_mode<synchronous>, transform_indices = @transform_7, window_bounds = array<i64: 128, 128>}, {pipeline_mode = #tpu.pipeline_mode<synchronous>, transform_indices = @transform_8, window_bounds = array<i64: 1, 128>}, {transform_indices = @transform_9, window_bounds = array<i64: 128, 128>}]} {
    %c0 = arith.constant 0 : index
    %c0_0 = arith.constant 0 : index
    %0 = vector.load %arg1[%c0, %c0_0] : memref<128x128xbf16, #tpu.memory_space<vmem>>, vector<128x128xbf16>
    %c0_1 = arith.constant 0 : index
    %c0_2 = arith.constant 0 : index
    %1 = vector.load %arg2[%c0_1, %c0_2] : memref<128x128xbf16, #tpu.memory_space<vmem>>, vector<128x128xbf16>
    %cst = arith.constant dense<0.000000e+00> : vector<128x128xf32>
    %2 = tpu.matmul %0, %1, %cst {dimension_numbers = #tpu.dot_dimension_numbers<[1], [0], [0], [1], [0, 0, 1, 1], [], []>} : vector<128x128xbf16>, vector<128x128xbf16>, vector<128x128xf32> -> vector<128x128xf32>
    %c0_3 = arith.constant 0 : index
    %c0_4 = arith.constant 0 : index
    %3 = vector.load %arg3[%c0_3, %c0_4] : memref<1x128xf32, #tpu.memory_space<vmem>>, vector<1x128xf32>
    %4 = vector.broadcast %3 : vector<1x128xf32> to vector<128x128xf32>
    %5 = arith.addf %2, %4 : vector<128x128xf32>
    %cst_5 = arith.constant 5.000000e-01 : f32
    %6 = vector.broadcast %cst_5 : f32 to vector<128x128xf32>
    %7 = arith.mulf %6, %5 : vector<128x128xf32>
    %cst_6 = arith.constant 5.000000e-01 : f32
    %8 = vector.broadcast %cst_6 : f32 to vector<128x128xf32>
    %9 = arith.mulf %8, %5 : vector<128x128xf32>
    %10 = math.tanh %9 : vector<128x128xf32>
    %cst_7 = arith.constant 1.000000e+00 : f32
    %11 = vector.broadcast %cst_7 : f32 to vector<128x128xf32>
    %12 = arith.addf %10, %11 : vector<128x128xf32>
    %13 = arith.mulf %7, %12 : vector<128x128xf32>
    %14 = arith.truncf %13 : vector<128x128xf32> to vector<128x128xbf16>
    %c0_8 = arith.constant 0 : index
    %c0_9 = arith.constant 0 : index
    %c0_10 = arith.constant 0 : index
    %15 = vector.load %arg4[%c0_8, %c0_9, %c0_10] : memref<2x128x128xbf16, #tpu.memory_space<vmem>>, vector<1x128x128xbf16>
    %16 = vector.shape_cast %15 : vector<1x128x128xbf16> to vector<128x128xbf16>
    %cst_11 = arith.constant dense<0.000000e+00> : vector<128x128xf32>
    %17 = tpu.matmul %14, %16, %cst_11 {dimension_numbers = #tpu.dot_dimension_numbers<[1], [0], [0], [1], [0, 0, 1, 1], [], []>} : vector<128x128xbf16>, vector<128x128xbf16>, vector<128x128xf32> -> vector<128x128xf32>
    %c0_12 = arith.constant 0 : index
    %c0_13 = arith.constant 0 : index
    %c0_14 = arith.constant 0 : index
    %18 = vector.load %arg5[%c0_12, %c0_13, %c0_14] : memref<2x1x128xf32, #tpu.memory_space<vmem>>, vector<1x1x128xf32>
    %19 = vector.shape_cast %18 : vector<1x1x128xf32> to vector<1x128xf32>
    %20 = vector.broadcast %19 : vector<1x128xf32> to vector<128x128xf32>
    %21 = arith.addf %17, %20 : vector<128x128xf32>
    %cst_15 = arith.constant 5.000000e-01 : f32
    %22 = vector.broadcast %cst_15 : f32 to vector<128x128xf32>
    %23 = arith.mulf %22, %21 : vector<128x128xf32>
    %cst_16 = arith.constant 5.000000e-01 : f32
    %24 = vector.broadcast %cst_16 : f32 to vector<128x128xf32>
    %25 = arith.mulf %24, %21 : vector<128x128xf32>
    %26 = math.tanh %25 : vector<128x128xf32>
    %cst_17 = arith.constant 1.000000e+00 : f32
    %27 = vector.broadcast %cst_17 : f32 to vector<128x128xf32>
    %28 = arith.addf %26, %27 : vector<128x128xf32>
    %29 = arith.mulf %23, %28 : vector<128x128xf32>
    %30 = arith.truncf %29 : vector<128x128xf32> to vector<128x128xbf16>
    %c0_18 = arith.constant 0 : index
    %c0_19 = arith.constant 0 : index
    %c0_20 = arith.constant 0 : index
    %31 = vector.load %arg6[%c0_18, %c0_19, %c0_20] : memref<2x128x128xbf16, #tpu.memory_space<vmem>>, vector<1x128x128xbf16>
    %32 = vector.shape_cast %31 : vector<1x128x128xbf16> to vector<128x128xbf16>
    %cst_21 = arith.constant dense<0.000000e+00> : vector<128x128xf32>
    %33 = tpu.matmul %30, %32, %cst_21 {dimension_numbers = #tpu.dot_dimension_numbers<[1], [0], [0], [1], [0, 0, 1, 1], [], []>} : vector<128x128xbf16>, vector<128x128xbf16>, vector<128x128xf32> -> vector<128x128xf32>
    %c0_22 = arith.constant 0 : index
    %c0_23 = arith.constant 0 : index
    %c0_24 = arith.constant 0 : index
    %34 = vector.load %arg7[%c0_22, %c0_23, %c0_24] : memref<2x1x128xf32, #tpu.memory_space<vmem>>, vector<1x1x128xf32>
    %35 = vector.shape_cast %34 : vector<1x1x128xf32> to vector<1x128xf32>
    %36 = vector.broadcast %35 : vector<1x128xf32> to vector<128x128xf32>
    %37 = arith.addf %33, %36 : vector<128x128xf32>
    %38 = arith.addf %5, %37 : vector<128x128xf32>
    %cst_25 = arith.constant 5.000000e-01 : f32
    %39 = vector.broadcast %cst_25 : f32 to vector<128x128xf32>
    %40 = arith.mulf %39, %38 : vector<128x128xf32>
    %cst_26 = arith.constant 5.000000e-01 : f32
    %41 = vector.broadcast %cst_26 : f32 to vector<128x128xf32>
    %42 = arith.mulf %41, %38 : vector<128x128xf32>
    %43 = math.tanh %42 : vector<128x128xf32>
    %cst_27 = arith.constant 1.000000e+00 : f32
    %44 = vector.broadcast %cst_27 : f32 to vector<128x128xf32>
    %45 = arith.addf %43, %44 : vector<128x128xf32>
    %46 = arith.mulf %40, %45 : vector<128x128xf32>
    %47 = arith.truncf %46 : vector<128x128xf32> to vector<128x128xbf16>
    %c1 = arith.constant 1 : index
    %c0_28 = arith.constant 0 : index
    %c0_29 = arith.constant 0 : index
    %48 = vector.load %arg4[%c1, %c0_28, %c0_29] : memref<2x128x128xbf16, #tpu.memory_space<vmem>>, vector<1x128x128xbf16>
    %49 = vector.shape_cast %48 : vector<1x128x128xbf16> to vector<128x128xbf16>
    %cst_30 = arith.constant dense<0.000000e+00> : vector<128x128xf32>
    %50 = tpu.matmul %47, %49, %cst_30 {dimension_numbers = #tpu.dot_dimension_numbers<[1], [0], [0], [1], [0, 0, 1, 1], [], []>} : vector<128x128xbf16>, vector<128x128xbf16>, vector<128x128xf32> -> vector<128x128xf32>
    %c1_31 = arith.constant 1 : index
    %c0_32 = arith.constant 0 : index
    %c0_33 = arith.constant 0 : index
    %51 = vector.load %arg5[%c1_31, %c0_32, %c0_33] : memref<2x1x128xf32, #tpu.memory_space<vmem>>, vector<1x1x128xf32>
    %52 = vector.shape_cast %51 : vector<1x1x128xf32> to vector<1x128xf32>
    %53 = vector.broadcast %52 : vector<1x128xf32> to vector<128x128xf32>
    %54 = arith.addf %50, %53 : vector<128x128xf32>
    %cst_34 = arith.constant 5.000000e-01 : f32
    %55 = vector.broadcast %cst_34 : f32 to vector<128x128xf32>
    %56 = arith.mulf %55, %54 : vector<128x128xf32>
    %cst_35 = arith.constant 5.000000e-01 : f32
    %57 = vector.broadcast %cst_35 : f32 to vector<128x128xf32>
    %58 = arith.mulf %57, %54 : vector<128x128xf32>
    %59 = math.tanh %58 : vector<128x128xf32>
    %cst_36 = arith.constant 1.000000e+00 : f32
    %60 = vector.broadcast %cst_36 : f32 to vector<128x128xf32>
    %61 = arith.addf %59, %60 : vector<128x128xf32>
    %62 = arith.mulf %56, %61 : vector<128x128xf32>
    %63 = arith.truncf %62 : vector<128x128xf32> to vector<128x128xbf16>
    %c1_37 = arith.constant 1 : index
    %c0_38 = arith.constant 0 : index
    %c0_39 = arith.constant 0 : index
    %64 = vector.load %arg6[%c1_37, %c0_38, %c0_39] : memref<2x128x128xbf16, #tpu.memory_space<vmem>>, vector<1x128x128xbf16>
    %65 = vector.shape_cast %64 : vector<1x128x128xbf16> to vector<128x128xbf16>
    %cst_40 = arith.constant dense<0.000000e+00> : vector<128x128xf32>
    %66 = tpu.matmul %63, %65, %cst_40 {dimension_numbers = #tpu.dot_dimension_numbers<[1], [0], [0], [1], [0, 0, 1, 1], [], []>} : vector<128x128xbf16>, vector<128x128xbf16>, vector<128x128xf32> -> vector<128x128xf32>
    %c1_41 = arith.constant 1 : index
    %c0_42 = arith.constant 0 : index
    %c0_43 = arith.constant 0 : index
    %67 = vector.load %arg7[%c1_41, %c0_42, %c0_43] : memref<2x1x128xf32, #tpu.memory_space<vmem>>, vector<1x1x128xf32>
    %68 = vector.shape_cast %67 : vector<1x1x128xf32> to vector<1x128xf32>
    %69 = vector.broadcast %68 : vector<1x128xf32> to vector<128x128xf32>
    %70 = arith.addf %66, %69 : vector<128x128xf32>
    %71 = arith.addf %38, %70 : vector<128x128xf32>
    %72 = arith.truncf %71 : vector<128x128xf32> to vector<128x128xbf16>
    %c0_44 = arith.constant 0 : index
    %c0_45 = arith.constant 0 : index
    %73 = vector.load %arg8[%c0_44, %c0_45] : memref<128x128xbf16, #tpu.memory_space<vmem>>, vector<128x128xbf16>
    %cst_46 = arith.constant dense<0.000000e+00> : vector<128x128xf32>
    %74 = tpu.matmul %72, %73, %cst_46 {dimension_numbers = #tpu.dot_dimension_numbers<[1], [0], [0], [1], [0, 0, 1, 1], [], []>} : vector<128x128xbf16>, vector<128x128xbf16>, vector<128x128xf32> -> vector<128x128xf32>
    %c0_47 = arith.constant 0 : index
    %c0_48 = arith.constant 0 : index
    %75 = vector.load %arg9[%c0_47, %c0_48] : memref<1x128xf32, #tpu.memory_space<vmem>>, vector<1x128xf32>
    %76 = vector.broadcast %75 : vector<1x128xf32> to vector<128x128xf32>
    %77 = arith.addf %74, %76 : vector<128x128xf32>
    %c0_49 = arith.constant 0 : index
    %c0_50 = arith.constant 0 : index
    %78 = vector.load %arg10[%c0_49, %c0_50] : memref<128x128xf32, #tpu.memory_space<vmem>>, vector<128x128xf32>
    tpu.vector_store %arg10[%c0_49, %c0_50], %77 {strides = array<i32>} : memref<128x128xf32, #tpu.memory_space<vmem>>, vector<128x128xf32>,
    return
  }
  func.func @transform_0(%arg0: i32) -> (i32, i32) {
    %c0_i32 = arith.constant 0 : i32
    %c0_i32_0 = arith.constant 0 : i32
    return %arg0, %c0_i32 : i32, i32
  }
  func.func @transform_1(%arg0: i32) -> (i32, i32) {
    %c0_i32 = arith.constant 0 : i32
    %c0_i32_0 = arith.constant 0 : i32
    %c0_i32_1 = arith.constant 0 : i32
    return %c0_i32, %c0_i32_0 : i32, i32
  }
  func.func @transform_2(%arg0: i32) -> (i32, i32) {
    %c0_i32 = arith.constant 0 : i32
    %c0_i32_0 = arith.constant 0 : i32
    %c0_i32_1 = arith.constant 0 : i32
    return %c0_i32, %c0_i32_0 : i32, i32
  }
  func.func @transform_3(%arg0: i32) -> (i32, i32, i32) {
    %c0_i32 = arith.constant 0 : i32
    %c0_i32_0 = arith.constant 0 : i32
    %c0_i32_1 = arith.constant 0 : i32
    %c0_i32_2 = arith.constant 0 : i32
    return %c0_i32, %c0_i32_0, %c0_i32_1 : i32, i32, i32
  }
  func.func @transform_4(%arg0: i32) -> (i32, i32, i32) {
    %c0_i32 = arith.constant 0 : i32
    %c0_i32_0 = arith.constant 0 : i32
    %c0_i32_1 = arith.constant 0 : i32
    %c0_i32_2 = arith.constant 0 : i32
    return %c0_i32, %c0_i32_0, %c0_i32_1 : i32, i32, i32
  }
  func.func @transform_5(%arg0: i32) -> (i32, i32, i32) {
    %c0_i32 = arith.constant 0 : i32
    %c0_i32_0 = arith.constant 0 : i32
    %c0_i32_1 = arith.constant 0 : i32
    %c0_i32_2 = arith.constant 0 : i32
    return %c0_i32, %c0_i32_0, %c0_i32_1 : i32, i32, i32
  }
  func.func @transform_6(%arg0: i32) -> (i32, i32, i32) {
    %c0_i32 = arith.constant 0 : i32
    %c0_i32_0 = arith.constant 0 : i32
    %c0_i32_1 = arith.constant 0 : i32
    %c0_i32_2 = arith.constant 0 : i32
    return %c0_i32, %c0_i32_0, %c0_i32_1 : i32, i32, i32
  }
  func.func @transform_7(%arg0: i32) -> (i32, i32) {
    %c0_i32 = arith.constant 0 : i32
    %c0_i32_0 = arith.constant 0 : i32
    %c0_i32_1 = arith.constant 0 : i32
    return %c0_i32, %c0_i32_0 : i32, i32
  }
  func.func @transform_8(%arg0: i32) -> (i32, i32) {
    %c0_i32 = arith.constant 0 : i32
    %c0_i32_0 = arith.constant 0 : i32
    %c0_i32_1 = arith.constant 0 : i32
    return %c0_i32, %c0_i32_0 : i32, i32
  }
  func.func @transform_9(%arg0: i32) -> (i32, i32) {
    %c0_i32 = arith.constant 0 : i32
    %c0_i32_0 = arith.constant 0 : i32
    return %arg0, %c0_i32 : i32, i32
  }
}

</mosaic_0001>

<llo_original>
// kernel: tpu_custom_call.1
$region0: #{tpu_custom_call.1}
  #allocation0 [shape = 'u32[]', space=smem, size = 0x4, offset = 0x4, fixed_abs, tag = 'smem constant byte address 0x4 - core index']
  #allocation1 [shape = 'u32[144,128]{1,0:T(1,128)}', space=vmem, size = 0x12000, scoped, tag = 'internal scratch']
  %s0 = inlined_call_operand.hbm [shape: bf16[256,128], index: 0, kind: input, shape index: {}]
  %s1 = inlined_call_operand.hbm [shape: bf16[128,128], index: 1, kind: input, shape index: {}]
  %s2 = inlined_call_operand.vmem [shape: f32[1,128], index: 2, kind: input, shape index: {}]
  %s3 = inlined_call_operand.hbm [shape: bf16[2,128,128], index: 3, kind: input, shape index: {}]
  %s4 = inlined_call_operand.vmem [shape: f32[2,1,128], index: 4, kind: input, shape index: {}]
  %s5 = inlined_call_operand.hbm [shape: bf16[2,128,128], index: 5, kind: input, shape index: {}]
  %s6 = inlined_call_operand.vmem [shape: f32[2,1,128], index: 6, kind: input, shape index: {}]
  %s7 = inlined_call_operand.hbm [shape: bf16[128,128], index: 7, kind: input, shape index: {}]
  %s8 = inlined_call_operand.vmem [shape: f32[1,128], index: 8, kind: input, shape index: {}]
  %s9 = inlined_call_operand.hbm [shape: f32[256,128], index: 9, kind: output, shape index: {}]
  %s10 = sld [smem:[#allocation0]]
  $region89: #{tpu_custom_call.1} parent=0
    _
  %s12 = ssub.s32 1, %s10
  %s13 = scalar_select 0, %s12, %s10
  $region1: #{tpu_custom_call.1} parent=0
    #allocation2 [shape = 'u8[65536]{0}', space=vmem, size = 0x10000, scoped, tag = 'input window, operand 0']
    #allocation3 [shape = 's32[2]{0}', space=sflag, size = 0x8, scoped, tag = 'scoped memory for tpu_custom_call.1']
    #allocation4 [shape = 's32[2]{0}', space=sflag, size = 0x8, scoped, tag = 'scoped memory for tpu_custom_call.1']
    #allocation5 [shape = 'u8[32768]{0}', space=vmem, size = 0x8000, scoped, tag = 'input window, operand 1, single buffered']
    #allocation6 [shape = 's32[1]{0}', space=sflag, size = 0x4, scoped, tag = 'scoped memory for tpu_custom_call.1']
    #allocation7 [shape = 'u8[65536]{0}', space=vmem, size = 0x10000, scoped, tag = 'input window, operand 3, single buffered']
    #allocation8 [shape = 'u8[65536]{0}', space=vmem, size = 0x10000, scoped, tag = 'input window, operand 5, single buffered']
    #allocation9 [shape = 's32[1]{0}', space=sflag, size = 0x4, scoped, tag = 'scoped memory for tpu_custom_call.1']
    #allocation10 [shape = 'u8[32768]{0}', space=vmem, size = 0x8000, scoped, tag = 'input window, operand 7, single buffered']
    #allocation11 [shape = 'u8[131072]{0}', space=vmem, size = 0x20000, scoped, tag = 'output window, operand 0']
    %14 = vsyncpa [#allocation3], 0
    %s15 = scalar_lea.sflag [#allocation3], 1
    %16 = vsyncpa %s15, 0
    %17 = vsyncpa [#allocation6], 0
    %18 = vsyncpa [#allocation9], 0
    %19 = vsyncpa [#allocation4], 0
    %s20 = scalar_lea.sflag [#allocation4], 1
    %21 = vsyncpa %s20, 0
    loop: start=0, step=1, limit=4
    $region2: #{tpu_custom_call.1} parent=1 // loop_pre_header
      _
    $region3: #{tpu_custom_call.1} parent=1 // loop_header
      %s23 = sphi 0, %s27
      %p24 = scmp.ge.s32.totalorder %s23, 4
      %s33 = sphi 0, %s35
      %s36 = sphi 0, %s33
      %s37 = sphi 0, %s36
      %s53 = sphi 0, %s37
      %s57 = sphi 0, %s57
      %s59 = sphi 0, %s57
      %s60 = sphi 0, %s59
      %s74 = sphi 0, %s60
      %s78 = sphi 0, %s78
      %s80 = sphi 0, %s78
      %s81 = sphi 0, %s80
      %s95 = sphi 0, %s81
      %s99 = sphi 0, %s99
      %s101 = sphi 0, %s99
      %s102 = sphi 0, %s101
      %s116 = sphi 0, %s102
      %s120 = sphi 0, %s120
      %s122 = sphi 0, %s120
      %s123 = sphi 0, %s122
      %s137 = sphi 0, %s123
      %s141 = sphi 0, %s141
      %s143 = sphi 0, %s141
      %s144 = sphi 0, %s143
      %s158 = sphi 0, %s144
      %s162 = sphi 0, %s162
      %s164 = sphi 0, %s162
      %s165 = sphi 0, %s164
      %s179 = sphi 0, %s165
      %s183 = sphi 0, %s183
      %s185 = sphi 0, %s183
      %s186 = sphi 0, %s185
      %s200 = sphi 0, %s186
      %s204 = sphi 0, %s204
      %s206 = sphi 0, %s204
      %s207 = sphi 0, %s206
      %s221 = sphi 0, %s207
      %s227 = sphi 0, %s229
      %s230 = sphi 0, %s227
      %s231 = sphi 0, %s230
      %s247 = sphi 0, %s231
    $region4: #{tpu_custom_call.1} parent=1 // loop_header_branch
      %26 = sbr.rel (%p24) target = $region8
    $region5: #{tpu_custom_call.1} parent=1 // loop_body
      %s28 = ssub.s32 %s23, 1
      %s29 = ssub.s32 %s23, 2
      %s30 = sadd.s32 %s23, 1
      %s31 = ssub.s32 %s23, %s30
      %p32 = scmp.eq.s32.totalorder %s31, 0
      %s34 = sadd.s32 %s33, 1
      %s35 = scalar_select %p32, %s33, %s34
      %p38 = pneg %p32
      %p39 = scmp.eq.s32.totalorder %s23, 1
      %p40 = por %p38, %p39
      %p41 = scmp.ne.s32.totalorder %s33, %s36
      %p42 = scmp.eq.s32.totalorder %s23, 0
      %p43 = por %p41, %p42
      %p44 = scmp.ne.s32.totalorder %s33, %s36
      %p45 = scmp.eq.s32.totalorder %s28, 1
      %p46 = por %p44, %p45
      %p47 = scmp.ne.s32.totalorder %s36, %s37
      %p48 = scmp.eq.s32.totalorder %s28, 0
      %p49 = por %p47, %p48
      %p50 = scmp.ne.s32.totalorder %s36, %s37
      %p51 = scmp.eq.s32.totalorder %s29, 1
      %p52 = por %p50, %p51
      %p54 = scmp.ne.s32.totalorder %s37, %s53
      %p55 = scmp.eq.s32.totalorder %s29, 0
      %p56 = por %p54, %p55
      %s58 = sadd.s32 %s57, 1
      %p61 = scmp.eq.s32.totalorder %s23, 1
      %p62 = scmp.ne.s32.totalorder %s57, %s59
      %p63 = scmp.eq.s32.totalorder %s23, 0
      %p64 = por %p62, %p63
      %p65 = scmp.ne.s32.totalorder %s57, %s59
      %p66 = scmp.eq.s32.totalorder %s28, 1
      %p67 = por %p65, %p66
      %p68 = scmp.ne.s32.totalorder %s59, %s60
      %p69 = scmp.eq.s32.totalorder %s28, 0
      %p70 = por %p68, %p69
      %p71 = scmp.ne.s32.totalorder %s59, %s60
      %p72 = scmp.eq.s32.totalorder %s29, 1
      %p73 = por %p71, %p72
      %p75 = scmp.ne.s32.totalorder %s60, %s74
      %p76 = scmp.eq.s32.totalorder %s29, 0
      %p77 = por %p75, %p76
      %s79 = sadd.s32 %s78, 1
      %p82 = scmp.eq.s32.totalorder %s23, 1
      %p83 = scmp.ne.s32.totalorder %s78, %s80
      %p84 = scmp.eq.s32.totalorder %s23, 0
      %p85 = por %p83, %p84
      %p86 = scmp.ne.s32.totalorder %s78, %s80
      %p87 = scmp.eq.s32.totalorder %s28, 1
      %p88 = por %p86, %p87
      %p89 = scmp.ne.s32.totalorder %s80, %s81
      %p90 = scmp.eq.s32.totalorder %s28, 0
      %p91 = por %p89, %p90
      %p92 = scmp.ne.s32.totalorder %s80, %s81
      %p93 = scmp.eq.s32.totalorder %s29, 1
      %p94 = por %p92, %p93
      %p96 = scmp.ne.s32.totalorder %s81, %s95
      %p97 = scmp.eq.s32.totalorder %s29, 0
      %p98 = por %p96, %p97
      %s100 = sadd.s32 %s99, 1
      %p103 = scmp.eq.s32.totalorder %s23, 1
      %p104 = scmp.ne.s32.totalorder %s99, %s101
      %p105 = scmp.eq.s32.totalorder %s23, 0
      %p106 = por %p104, %p105
      %p107 = scmp.ne.s32.totalorder %s99, %s101
      %p108 = scmp.eq.s32.totalorder %s28, 1
      %p109 = por %p107, %p108
      %p110 = scmp.ne.s32.totalorder %s101, %s102
      %p111 = scmp.eq.s32.totalorder %s28, 0
      %p112 = por %p110, %p111
      %p113 = scmp.ne.s32.totalorder %s101, %s102
      %p114 = scmp.eq.s32.totalorder %s29, 1
      %p115 = por %p113, %p114
      %p117 = scmp.ne.s32.totalorder %s102, %s116
      %p118 = scmp.eq.s32.totalorder %s29, 0
      %p119 = por %p117, %p118
      %s121 = sadd.s32 %s120, 1
      %p124 = scmp.eq.s32.totalorder %s23, 1
      %p125 = scmp.ne.s32.totalorder %s120, %s122
      %p126 = scmp.eq.s32.totalorder %s23, 0
      %p127 = por %p125, %p126
      %p128 = scmp.ne.s32.totalorder %s120, %s122
      %p129 = scmp.eq.s32.totalorder %s28, 1
      %p130 = por %p128, %p129
      %p131 = scmp.ne.s32.totalorder %s122, %s123
      %p132 = scmp.eq.s32.totalorder %s28, 0
      %p133 = por %p131, %p132
      %p134 = scmp.ne.s32.totalorder %s122, %s123
      %p135 = scmp.eq.s32.totalorder %s29, 1
      %p136 = por %p134, %p135
      %p138 = scmp.ne.s32.totalorder %s123, %s137
      %p139 = scmp.eq.s32.totalorder %s29, 0
      %p140 = por %p138, %p139
      %s142 = sadd.s32 %s141, 1
      %p145 = scmp.eq.s32.totalorder %s23, 1
      %p146 = scmp.ne.s32.totalorder %s141, %s143
      %p147 = scmp.eq.s32.totalorder %s23, 0
      %p148 = por %p146, %p147
      %p149 = scmp.ne.s32.totalorder %s141, %s143
      %p150 = scmp.eq.s32.totalorder %s28, 1
      %p151 = por %p149, %p150
      %p152 = scmp.ne.s32.totalorder %s143, %s144
      %p153 = scmp.eq.s32.totalorder %s28, 0
      %p154 = por %p152, %p153
      %p155 = scmp.ne.s32.totalorder %s143, %s144
      %p156 = scmp.eq.s32.totalorder %s29, 1
      %p157 = por %p155, %p156
      %p159 = scmp.ne.s32.totalorder %s144, %s158
      %p160 = scmp.eq.s32.totalorder %s29, 0
      %p161 = por %p159, %p160
      %s163 = sadd.s32 %s162, 1
      %p166 = scmp.eq.s32.totalorder %s23, 1
      %p167 = scmp.ne.s32.totalorder %s162, %s164
      %p168 = scmp.eq.s32.totalorder %s23, 0
      %p169 = por %p167, %p168
      %p170 = scmp.ne.s32.totalorder %s162, %s164
      %p171 = scmp.eq.s32.totalorder %s28, 1
      %p172 = por %p170, %p171
      %p173 = scmp.ne.s32.totalorder %s164, %s165
      %p174 = scmp.eq.s32.totalorder %s28, 0
      %p175 = por %p173, %p174
      %p176 = scmp.ne.s32.totalorder %s164, %s165
      %p177 = scmp.eq.s32.totalorder %s29, 1
      %p178 = por %p176, %p177
      %p180 = scmp.ne.s32.totalorder %s165, %s179
      %p181 = scmp.eq.s32.totalorder %s29, 0
      %p182 = por %p180, %p181
      %s184 = sadd.s32 %s183, 1
      %p187 = scmp.eq.s32.totalorder %s23, 1
      %p188 = scmp.ne.s32.totalorder %s183, %s185
      %p189 = scmp.eq.s32.totalorder %s23, 0
      %p190 = por %p188, %p189
      %p191 = scmp.ne.s32.totalorder %s183, %s185
      %p192 = scmp.eq.s32.totalorder %s28, 1
      %p193 = por %p191, %p192
      %p194 = scmp.ne.s32.totalorder %s185, %s186
      %p195 = scmp.eq.s32.totalorder %s28, 0
      %p196 = por %p194, %p195
      %p197 = scmp.ne.s32.totalorder %s185, %s186
      %p198 = scmp.eq.s32.totalorder %s29, 1
      %p199 = por %p197, %p198
      %p201 = scmp.ne.s32.totalorder %s186, %s200
      %p202 = scmp.eq.s32.totalorder %s29, 0
      %p203 = por %p201, %p202
      %s205 = sadd.s32 %s204, 1
      %p208 = scmp.eq.s32.totalorder %s23, 1
      %p209 = scmp.ne.s32.totalorder %s204, %s206
      %p210 = scmp.eq.s32.totalorder %s23, 0
      %p211 = por %p209, %p210
      %p212 = scmp.ne.s32.totalorder %s204, %s206
      %p213 = scmp.eq.s32.totalorder %s28, 1
      %p214 = por %p212, %p213
      %p215 = scmp.ne.s32.totalorder %s206, %s207
      %p216 = scmp.eq.s32.totalorder %s28, 0
      %p217 = por %p215, %p216
      %p218 = scmp.ne.s32.totalorder %s206, %s207
      %p219 = scmp.eq.s32.totalorder %s29, 1
      %p220 = por %p218, %p219
      %p222 = scmp.ne.s32.totalorder %s207, %s221
      %p223 = scmp.eq.s32.totalorder %s29, 0
      %p224 = por %p222, %p223
      %s225 = ssub.s32 %s23, %s30
      %p226 = scmp.eq.s32.totalorder %s225, 0
      %s228 = sadd.s32 %s227, 1
      %s229 = scalar_select %p226, %s227, %s228
      %p232 = pneg %p226
      %p233 = scmp.eq.s32.totalorder %s23, 1
      %p234 = por %p232, %p233
      %p235 = scmp.ne.s32.totalorder %s227, %s230
      %p236 = scmp.eq.s32.totalorder %s23, 0
      %p237 = por %p235, %p236
      %p238 = scmp.ne.s32.totalorder %s227, %s230
      %p239 = scmp.eq.s32.totalorder %s28, 1
      %p240 = por %p238, %p239
      %p241 = scmp.ne.s32.totalorder %s230, %s231
      %p242 = scmp.eq.s32.totalorder %s28, 0
      %p243 = por %p241, %p242
      %p244 = scmp.ne.s32.totalorder %s230, %s231
      %p245 = scmp.eq.s32.totalorder %s29, 1
      %p246 = por %p244, %p245
      %p248 = scmp.ne.s32.totalorder %s231, %s247
      %p249 = scmp.eq.s32.totalorder %s29, 0
      %p250 = por %p248, %p249
      %p251 = scmp.le.s32.totalorder 1, %s23
      %p252 = scmp.lt.s32.totalorder %s23, 3
      %p253 = pnand %p251, %p252
      %p254 = pneg %p253
      // Predicated region
      $region9: #{tpu_custom_call.1} parent=5 // pred_check
        _
      $region10: #{tpu_custom_call.1} parent=5 // pred_check_branch
        %256 = sbr.rel (%p253) target = $region12
      $region11: #{tpu_custom_call.1} parent=5 // pred_region
        %s257 = ssub.s32 %s23, 1
        // Predicated region
        $region13: #{tpu_custom_call.1} parent=11 // pred_check
          %p258 = pneg %p70
        $region14: #{tpu_custom_call.1} parent=11 // pred_check_branch
          %260 = sbr.rel (%p258) target = $region16
        $region15: #{tpu_custom_call.1} parent=11 // pred_region
          %s262 = ssub.s32 1024, 1024
          %263 = vsyncadd [#allocation6], %s262
          %s264 = sshll.u32 [#allocation5], 4
          %s265 = int_to_ptr.vmem [resolvable:$true] %s264
          %270 = dma.hbm_to_vmem [thread:$0]  %s1, 1024, %s265, [#allocation6], 64, 64, 4
        $region16: #{tpu_custom_call.1} parent=11 // pred_fallthru
          _
        // Predicated region
        $region17: #{tpu_custom_call.1} parent=11 // pred_check
          %p271 = pneg %p91
        $region18: #{tpu_custom_call.1} parent=11 // pred_check_branch
          %273 = sbr.rel (%p271) target = $region20
        $region19: #{tpu_custom_call.1} parent=11 // pred_region
          _
        $region20: #{tpu_custom_call.1} parent=11 // pred_fallthru
          _
        // Predicated region
        $region21: #{tpu_custom_call.1} parent=11 // pred_check
          %p274 = pneg %p112
        $region22: #{tpu_custom_call.1} parent=11 // pred_check_branch
          %276 = sbr.rel (%p274) target = $region24
        $region23: #{tpu_custom_call.1} parent=11 // pred_region
          %s278 = ssub.s32 2048, 2048
          %279 = vsyncadd [#allocation6], %s278
          %s280 = sshll.u32 [#allocation7], 4
          %s281 = int_to_ptr.vmem [resolvable:$true] %s280
          %286 = dma.hbm_to_vmem [thread:$0]  %s3, 2048, %s281, [#allocation6], 64, 64, 4
        $region24: #{tpu_custom_call.1} parent=11 // pred_fallthru
          _
        // Predicated region
        $region25: #{tpu_custom_call.1} parent=11 // pred_check
          %p287 = pneg %p133
        $region26: #{tpu_custom_call.1} parent=11 // pred_check_branch
          %289 = sbr.rel (%p287) target = $region28
        $region27: #{tpu_custom_call.1} parent=11 // pred_region
          _
        $region28: #{tpu_custom_call.1} parent=11 // pred_fallthru
          _
        // Predicated region
        $region29: #{tpu_custom_call.1} parent=11 // pred_check
          %p290 = pneg %p154
        $region30: #{tpu_custom_call.1} parent=11 // pred_check_branch
          %292 = sbr.rel (%p290) target = $region32
        $region31: #{tpu_custom_call.1} parent=11 // pred_region
          %s294 = ssub.s32 2048, 2048
          %295 = vsyncadd [#allocation9], %s294
          %s296 = sshll.u32 [#allocation8], 4
          %s297 = int_to_ptr.vmem [resolvable:$true] %s296
          %302 = dma.hbm_to_vmem [thread:$0]  %s5, 2048, %s297, [#allocation9], 64, 64, 4
        $region32: #{tpu_custom_call.1} parent=11 // pred_fallthru
          _
        // Predicated region
        $region33: #{tpu_custom_call.1} parent=11 // pred_check
          %p303 = pneg %p175
        $region34: #{tpu_custom_call.1} parent=11 // pred_check_branch
          %305 = sbr.rel (%p303) target = $region36
        $region35: #{tpu_custom_call.1} parent=11 // pred_region
          _
        $region36: #{tpu_custom_call.1} parent=11 // pred_fallthru
          _
        // Predicated region
        $region37: #{tpu_custom_call.1} parent=11 // pred_check
          %p306 = pneg %p196
        $region38: #{tpu_custom_call.1} parent=11 // pred_check_branch
          %308 = sbr.rel (%p306) target = $region40
        $region39: #{tpu_custom_call.1} parent=11 // pred_region
          %s310 = ssub.s32 1024, 1024
          %311 = vsyncadd [#allocation9], %s310
          %s312 = sshll.u32 [#allocation10], 4
          %s313 = int_to_ptr.vmem [resolvable:$true] %s312
          %318 = dma.hbm_to_vmem [thread:$0]  %s7, 1024, %s313, [#allocation9], 64, 64, 4
        $region40: #{tpu_custom_call.1} parent=11 // pred_fallthru
          _
        // Predicated region
        $region41: #{tpu_custom_call.1} parent=11 // pred_check
          %p319 = pneg %p217
        $region42: #{tpu_custom_call.1} parent=11 // pred_check_branch
          %321 = sbr.rel (%p319) target = $region44
        $region43: #{tpu_custom_call.1} parent=11 // pred_region
          _
        $region44: #{tpu_custom_call.1} parent=11 // pred_fallthru
          _
      $region12: #{tpu_custom_call.1} parent=5 // pred_fallthru
        _
      %p322 = scmp.lt.s32.totalorder %s23, 2
      // Predicated region
      $region45: #{tpu_custom_call.1} parent=5 // pred_check
        %p323 = pneg %p322
      $region46: #{tpu_custom_call.1} parent=5 // pred_check_branch
        %325 = sbr.rel (%p323) target = $region48
      $region47: #{tpu_custom_call.1} parent=5 // pred_region
        // Predicated region
        $region49: #{tpu_custom_call.1} parent=47 // pred_check
          %p326 = pneg %p43
        $region50: #{tpu_custom_call.1} parent=47 // pred_check_branch
          %328 = sbr.rel (%p326) target = $region52
        $region51: #{tpu_custom_call.1} parent=47 // pred_region
          %s329 = sand.u32 %s33, 1
          %s330 = scalar_lea.sflag [#allocation3], %s329
          %s331 = sand.u32 %s33, 1
          %s332 = smul.addr %s331, 64
          %s333 = scalar_lea.vmem [#allocation2], %s332
          %s334 = smul.u32 16, %s23
          %s336 = ssub.s32 1024, 1024
          %337 = vsyncadd %s330, %s336
          %s338 = smul.addr %s334, 64
          %s339 = scalar_lea.hbm %s0, %s338
          %s340 = sshll.u32 %s333, 4
          %s341 = int_to_ptr.vmem [resolvable:$true] %s340
          %346 = dma.hbm_to_vmem [thread:$0]  %s339, 1024, %s341, %s330, 64, 64, 4
        $region52: #{tpu_custom_call.1} parent=47 // pred_fallthru
          _
      $region48: #{tpu_custom_call.1} parent=5 // pred_fallthru
        _
      %p347 = scmp.le.s32.totalorder 1, %s23
      %p348 = scmp.lt.s32.totalorder %s23, 3
      %p349 = pnand %p347, %p348
      %p350 = pneg %p349
      // Predicated region
      $region53: #{tpu_custom_call.1} parent=5 // pred_check
        _
      $region54: #{tpu_custom_call.1} parent=5 // pred_check_branch
        %352 = sbr.rel (%p349) target = $region56
      $region55: #{tpu_custom_call.1} parent=5 // pred_region
        %s353 = ssub.s32 %s23, 1
        %s354 = sand.u32 %s36, 1
        %s355 = scalar_lea.sflag [#allocation3], %s354
        %s356 = sand.u32 %s36, 1
        %s357 = smul.addr %s356, 64
        %s358 = scalar_lea.vmem [#allocation2], %s357
        // Predicated region
        $region57: #{tpu_custom_call.1} parent=55 // pred_check
          %p359 = pneg %p49
        $region58: #{tpu_custom_call.1} parent=55 // pred_check_branch
          %361 = sbr.rel (%p359) target = $region60
        $region59: #{tpu_custom_call.1} parent=55 // pred_region
          %362 = dma.done %s355, 1024
        $region60: #{tpu_custom_call.1} parent=55 // pred_fallthru
          _
        // Predicated region
        $region61: #{tpu_custom_call.1} parent=55 // pred_check
          %p363 = pneg %p70
        $region62: #{tpu_custom_call.1} parent=55 // pred_check_branch
          %365 = sbr.rel (%p363) target = $region64
        $region63: #{tpu_custom_call.1} parent=55 // pred_region
          %366 = dma.done [#allocation6], 1024
        $region64: #{tpu_custom_call.1} parent=55 // pred_fallthru
          _
        // Predicated region
        $region65: #{tpu_custom_call.1} parent=55 // pred_check
          %p367 = pneg %p112
        $region66: #{tpu_custom_call.1} parent=55 // pred_check_branch
          %369 = sbr.rel (%p367) target = $region68
        $region67: #{tpu_custom_call.1} parent=55 // pred_region
          %370 = dma.done [#allocation6], 2048
        $region68: #{tpu_custom_call.1} parent=55 // pred_fallthru
          _
        // Predicated region
        $region69: #{tpu_custom_call.1} parent=55 // pred_check
          %p371 = pneg %p154
        $region70: #{tpu_custom_call.1} parent=55 // pred_check_branch
          %373 = sbr.rel (%p371) target = $region72
        $region71: #{tpu_custom_call.1} parent=55 // pred_region
          %374 = dma.done [#allocation9], 2048
        $region72: #{tpu_custom_call.1} parent=55 // pred_fallthru
          _
        // Predicated region
        $region73: #{tpu_custom_call.1} parent=55 // pred_check
          %p375 = pneg %p196
        $region74: #{tpu_custom_call.1} parent=55 // pred_check_branch
          %377 = sbr.rel (%p375) target = $region76
        $region75: #{tpu_custom_call.1} parent=55 // pred_region
          %378 = dma.done [#allocation9], 1024
        $region76: #{tpu_custom_call.1} parent=55 // pred_fallthru
          _
        %s379 = sand.u32 %s36, 1
        %s380 = scalar_lea.sflag [#allocation3], %s379
        %s381 = sand.u32 %s36, 1
        %s382 = smul.addr %s381, 64
        %s383 = scalar_lea.vmem [#allocation2], %s382
        %p384 = pneg %p49
        %p385 = pneg %p46
        %p386 = pneg %p70
        %p387 = pneg %p67
        %p388 = pneg %p91
        %p389 = pneg %p88
        %p390 = pneg %p112
        %p391 = pneg %p109
        %p392 = pneg %p133
        %p393 = pneg %p130
        %p394 = pneg %p154
        %p395 = pneg %p151
        %p396 = pneg %p175
        %p397 = pneg %p172
        %p398 = pneg %p196
        %p399 = pneg %p193
        %p400 = pneg %p217
        %p401 = pneg %p214
        %p402 = pneg %p243
        %p403 = pneg %p240
        %s404 = sand.u32 %s230, 1
        %s405 = scalar_lea.sflag [#allocation4], %s404
        %s406 = sand.u32 %s230, 1
        %s407 = smul.addr %s406, 128
        %s408 = scalar_lea.vmem [#allocation11], %s407
        %s409 = smul.u32 16, %s28
        %s410 = smul.u32 16, %s28
        %v412 = vld [vmem:[%s358] sm:$0xf]
        %v413 = vld [vmem:[%s358 + $0x4] sm:$0xf]
        %v414 = vld [vmem:[%s358 + $0x8] sm:$0xf]
        %v415 = vld [vmem:[%s358 + $0xc] sm:$0xf]
        %v416 = vld [vmem:[%s358 + $0x10] sm:$0xf]
        %v417 = vld [vmem:[%s358 + $0x14] sm:$0xf]
        %v418 = vld [vmem:[%s358 + $0x18] sm:$0xf]
        %v419 = vld [vmem:[%s358 + $0x1c] sm:$0xf]
        %v420 = vld [vmem:[%s358 + $0x20] sm:$0xf]
        %v421 = vld [vmem:[%s358 + $0x24] sm:$0xf]
        %v422 = vld [vmem:[%s358 + $0x28] sm:$0xf]
        %v423 = vld [vmem:[%s358 + $0x2c] sm:$0xf]
        %v424 = vld [vmem:[%s358 + $0x30] sm:$0xf]
        %v425 = vld [vmem:[%s358 + $0x34] sm:$0xf]
        %v426 = vld [vmem:[%s358 + $0x38] sm:$0xf]
        %v427 = vld [vmem:[%s358 + $0x3c] sm:$0xf]
        %v428 = vld [vmem:[#allocation5] sm:$0xf]
        %v429 = vld [vmem:[#allocation5 + $0x4] sm:$0xf]
        %v430 = vld [vmem:[#allocation5 + $0x8] sm:$0xf]
        %v431 = vld [vmem:[#allocation5 + $0xc] sm:$0xf]
        %v432 = vld [vmem:[#allocation5 + $0x10] sm:$0xf]
        %v433 = vld [vmem:[#allocation5 + $0x14] sm:$0xf]
        %v434 = vld [vmem:[#allocation5 + $0x18] sm:$0xf]
        %v435 = vld [vmem:[#allocation5 + $0x1c] sm:$0xf]
        %v436 = vld [vmem:[#allocation5 + $0x20] sm:$0xf]
        %v437 = vld [vmem:[#allocation5 + $0x24] sm:$0xf]
        %v438 = vld [vmem:[#allocation5 + $0x28] sm:$0xf]
        %v439 = vld [vmem:[#allocation5 + $0x2c] sm:$0xf]
        %v440 = vld [vmem:[#allocation5 + $0x30] sm:$0xf]
        %v441 = vld [vmem:[#allocation5 + $0x34] sm:$0xf]
        %v442 = vld [vmem:[#allocation5 + $0x38] sm:$0xf]
        %v443 = vld [vmem:[#allocation5 + $0x3c] sm:$0xf]
        %v444 = vld [vmem:[%s2] sm:$0x1]
        %v446 = vlaneseq
        %v447 = vshrl.u32 %v446, 7
        %v448 = vsub.s32 0, %v447
        %v449 = vrot.slane %v444, %v448
        %v467 = vunpack.c.l.b16 %v412
        %v468 = vunpack.c.l.b16 %v413
        %v469 = vunpack.c.l.b16 %v414
        %v470 = vunpack.c.l.b16 %v415
        %v471 = vunpack.c.l.b16 %v416
        %v472 = vunpack.c.l.b16 %v417
        %v473 = vunpack.c.l.b16 %v418
        %v474 = vunpack.c.l.b16 %v419
        %v475 = vunpack.c.l.b16 %v420
        %v476 = vunpack.c.l.b16 %v421
        %v477 = vunpack.c.l.b16 %v422
        %v478 = vunpack.c.l.b16 %v423
        %v479 = vunpack.c.l.b16 %v424
        %v480 = vunpack.c.l.b16 %v425
        %v481 = vunpack.c.l.b16 %v426
        %v482 = vunpack.c.l.b16 %v427
        %v483 = vpack.c.b16 %v468, %v467
        %v484 = vpack.c.b16 %v470, %v469
        %v485 = vpack.c.b16 %v472, %v471
        %v486 = vpack.c.b16 %v474, %v473
        %v487 = vpack.c.b16 %v476, %v475
        %v488 = vpack.c.b16 %v478, %v477
        %v489 = vpack.c.b16 %v480, %v479
        %v490 = vpack.c.b16 %v482, %v481
        %v515 = vunpack.c.l.b16 %v428
        %v516 = vunpack.c.l.b16 %v429
        %v517 = vunpack.c.l.b16 %v430
        %v518 = vunpack.c.l.b16 %v431
        %v519 = vunpack.c.l.b16 %v432
        %v520 = vunpack.c.l.b16 %v433
        %v521 = vunpack.c.l.b16 %v434
        %v522 = vunpack.c.l.b16 %v435
        %v523 = vunpack.c.l.b16 %v436
        %v524 = vunpack.c.l.b16 %v437
        %v525 = vunpack.c.l.b16 %v438
        %v526 = vunpack.c.l.b16 %v439
        %v527 = vunpack.c.l.b16 %v440
        %v528 = vunpack.c.l.b16 %v441
        %v529 = vunpack.c.l.b16 %v442
        %v530 = vunpack.c.l.b16 %v443
        %v531 = vpack.c.b16 %v516, %v515
        %v532 = vpack.c.b16 %v518, %v517
        %v533 = vpack.c.b16 %v520, %v519
        %v534 = vpack.c.b16 %v522, %v521
        %v535 = vpack.c.b16 %v524, %v523
        %v536 = vpack.c.b16 %v526, %v525
        %v537 = vpack.c.b16 %v528, %v527
        %v538 = vpack.c.b16 %v530, %v529
        %547 = vmatprep.subr.bf16.mxu0 0
        %548 = vmatpush1.bf16.msra.mxu0 %v531
        %549 = vmatprep.subr.bf16.mxu0 0
        %550 = vmatpush1.bf16.msra.mxu0 %v532
        %551 = vmatprep.subr.bf16.mxu0 0
        %552 = vmatpush1.bf16.msra.mxu0 %v533
        %553 = vmatprep.subr.bf16.mxu0 0
        %554 = vmatpush1.bf16.msra.mxu0 %v534
        %555 = vmatprep.subr.bf16.mxu0 0
        %556 = vmatpush1.bf16.msra.mxu0 %v535
        %557 = vmatprep.subr.bf16.mxu0 0
        %558 = vmatpush1.bf16.msra.mxu0 %v536
        %559 = vmatprep.subr.bf16.mxu0 0
        %560 = vmatpush1.bf16.msra.mxu0 %v537
        %561 = vmatprep.subr.bf16.mxu0 0
        %562 = vmatpush1.bf16.msra.mxu0 %v538
        %563 = vmatprep.subr.bf16.mxu0 0
        %564 = vmatpush1.bf16.msra.mxu0 0
        %565 = vmatprep.subr.bf16.mxu0 0
        %566 = vmatpush1.bf16.msra.mxu0 0
        %567 = vmatprep.subr.bf16.mxu0 0
        %568 = vmatpush1.bf16.msra.mxu0 0
        %569 = vmatprep.subr.bf16.mxu0 0
        %570 = vmatpush1.bf16.msra.mxu0 0
        %571 = vmatprep.subr.bf16.mxu0 0
        %572 = vmatpush1.bf16.msra.mxu0 0
        %573 = vmatprep.subr.bf16.mxu0 0
        %574 = vmatpush1.bf16.msra.mxu0 0
        %575 = vmatprep.subr.bf16.mxu0 0
        %576 = vmatpush1.bf16.msra.mxu0 0
        %577 = vmatprep.subr.bf16.mxu0 0
        %578 = vmatpush1.bf16.msra.mxu0 0
        %579 = vmatprep.mubr.bf16.mxu0 0
        %580 = vmatmul.mubr.bf16.gmra.mrb[0].mxu0 %v483
        %v581 = vpop.f32.mrb[0].mxu0
        %v582 = vadd.f32 %v449, %v581
        %v583 = vpop.f32.mrb[0].mxu0
        %v584 = vpop.f32.mrb[0].mxu0
        %v585 = vadd.f32 %v449, %v584
        %v586 = vpop.f32.mrb[0].mxu0
        %587 = vmatprep.mubr.bf16.mxu0 0
        %588 = vmatmul.mubr.bf16.gmra.mrb[0].mxu0 %v484
        %v589 = vpop.f32.mrb[0].mxu0
        %v590 = vadd.f32 %v449, %v589
        %v591 = vpop.f32.mrb[0].mxu0
        %v592 = vpop.f32.mrb[0].mxu0
        %v593 = vadd.f32 %v449, %v592
        %v594 = vpop.f32.mrb[0].mxu0
        %595 = vmatprep.mubr.bf16.mxu0 0
        %596 = vmatmul.mubr.bf16.gmra.mrb[0].mxu0 %v485
        %v597 = vpop.f32.mrb[0].mxu0
        %v598 = vadd.f32 %v449, %v597
        %v599 = vpop.f32.mrb[0].mxu0
        %v600 = vpop.f32.mrb[0].mxu0
        %v601 = vadd.f32 %v449, %v600
        %v602 = vpop.f32.mrb[0].mxu0
        %603 = vmatprep.mubr.bf16.mxu0 0
        %604 = vmatmul.mubr.bf16.gmra.mrb[0].mxu0 %v486
        %v605 = vpop.f32.mrb[0].mxu0
        %v606 = vadd.f32 %v449, %v605
        %v607 = vpop.f32.mrb[0].mxu0
        %v608 = vpop.f32.mrb[0].mxu0
        %v609 = vadd.f32 %v449, %v608
        %v610 = vpop.f32.mrb[0].mxu0
        %611 = vmatprep.mubr.bf16.mxu0 0
        %612 = vmatmul.mubr.bf16.gmra.mrb[0].mxu0 %v487
        %v613 = vpop.f32.mrb[0].mxu0
        %v614 = vadd.f32 %v449, %v613
        %v615 = vpop.f32.mrb[0].mxu0
        %v616 = vpop.f32.mrb[0].mxu0
        %v617 = vadd.f32 %v449, %v616
        %v618 = vpop.f32.mrb[0].mxu0
        %619 = vmatprep.mubr.bf16.mxu0 0
        %620 = vmatmul.mubr.bf16.gmra.mrb[0].mxu0 %v488
        %v621 = vpop.f32.mrb[0].mxu0
        %v622 = vadd.f32 %v449, %v621
        %v623 = vpop.f32.mrb[0].mxu0
        %v624 = vpop.f32.mrb[0].mxu0
        %v625 = vadd.f32 %v449, %v624
        %v626 = vpop.f32.mrb[0].mxu0
        %627 = vmatprep.mubr.bf16.mxu0 0
        %628 = vmatmul.mubr.bf16.gmra.mrb[0].mxu0 %v489
        %v629 = vpop.f32.mrb[0].mxu0
        %v630 = vadd.f32 %v449, %v629
        %v631 = vpop.f32.mrb[0].mxu0
        %v632 = vpop.f32.mrb[0].mxu0
        %v633 = vadd.f32 %v449, %v632
        %v634 = vpop.f32.mrb[0].mxu0
        %635 = vmatprep.mubr.bf16.mxu0 0
        %636 = vmatmul.mubr.bf16.gmra.mrb[0].mxu0 %v490
        %v637 = vpop.f32.mrb[0].mxu0
        %v638 = vadd.f32 %v449, %v637
        %v639 = vpop.f32.mrb[0].mxu0
        %v640 = vpop.f32.mrb[0].mxu0
        %v641 = vadd.f32 %v449, %v640
        %v642 = vpop.f32.mrb[0].mxu0
        %643 = vdwg.mxu0
        %v644 = vmul.f32 %v582, 0.5
        %v645 = vmul.f32 %v585, 0.5
        %v646 = vmul.f32 %v590, 0.5
        %v647 = vmul.f32 %v593, 0.5
        %v648 = vmul.f32 %v598, 0.5
        %v649 = vmul.f32 %v601, 0.5
        %v650 = vmul.f32 %v606, 0.5
        %v651 = vmul.f32 %v609, 0.5
        %v652 = vmul.f32 %v614, 0.5
        %v653 = vmul.f32 %v617, 0.5
        %v654 = vmul.f32 %v622, 0.5
        %v655 = vmul.f32 %v625, 0.5
        %v656 = vmul.f32 %v630, 0.5
        %v657 = vmul.f32 %v633, 0.5
        %v658 = vmul.f32 %v638, 0.5
        %v659 = vmul.f32 %v641, 0.5
        %v660 = vtanh.pop %v644
        %v661 = vtanh.pop %v645
        %v662 = vtanh.pop %v646
        %v663 = vtanh.pop %v647
        %v664 = vtanh.pop %v648
        %v665 = vtanh.pop %v649
        %v666 = vtanh.pop %v650
        %v667 = vtanh.pop %v651
        %v668 = vtanh.pop %v652
        %v669 = vtanh.pop %v653
        %v670 = vtanh.pop %v654
        %v671 = vtanh.pop %v655
        %v672 = vtanh.pop %v656
        %v673 = vtanh.pop %v657
        %v674 = vtanh.pop %v658
        %v675 = vtanh.pop %v659
        %v676 = vadd.f32 %v660, 1.0
        %v677 = vadd.f32 %v661, 1.0
        %v678 = vadd.f32 %v662, 1.0
        %v679 = vadd.f32 %v663, 1.0
        %v680 = vadd.f32 %v664, 1.0
        %v681 = vadd.f32 %v665, 1.0
        %v682 = vadd.f32 %v666, 1.0
        %v683 = vadd.f32 %v667, 1.0
        %v684 = vadd.f32 %v668, 1.0
        %v685 = vadd.f32 %v669, 1.0
        %v686 = vadd.f32 %v670, 1.0
        %v687 = vadd.f32 %v671, 1.0
        %v688 = vadd.f32 %v672, 1.0
        %v689 = vadd.f32 %v673, 1.0
        %v690 = vadd.f32 %v674, 1.0
        %v691 = vadd.f32 %v675, 1.0
        %v692 = vmul.f32 %v644, %v676
        %v693 = vmul.f32 %v645, %v677
        %v694 = vmul.f32 %v646, %v678
        %v695 = vmul.f32 %v647, %v679
        %v696 = vmul.f32 %v648, %v680
        %v697 = vmul.f32 %v649, %v681
        %v698 = vmul.f32 %v650, %v682
        %v699 = vmul.f32 %v651, %v683
        %v700 = vmul.f32 %v652, %v684
        %v701 = vmul.f32 %v653, %v685
        %v702 = vmul.f32 %v654, %v686
        %v703 = vmul.f32 %v655, %v687
        %v704 = vmul.f32 %v656, %v688
        %v705 = vmul.f32 %v657, %v689
        %v706 = vmul.f32 %v658, %v690
        %v707 = vmul.f32 %v659, %v691
        %v708 = vpack.c.bf16 %v693, %v692
        %v709 = vpack.c.bf16 %v695, %v694
        %v710 = vpack.c.bf16 %v697, %v696
        %v711 = vpack.c.bf16 %v699, %v698
        %v712 = vpack.c.bf16 %v701, %v700
        %v713 = vpack.c.bf16 %v703, %v702
        %v714 = vpack.c.bf16 %v705, %v704
        %v715 = vpack.c.bf16 %v707, %v706
        %v716 = vld [vmem:[#allocation7] sm:$0xf]
        %v717 = vld [vmem:[#allocation7 + $0x4] sm:$0xf]
        %v718 = vld [vmem:[#allocation7 + $0x8] sm:$0xf]
        %v719 = vld [vmem:[#allocation7 + $0xc] sm:$0xf]
        %v720 = vld [vmem:[#allocation7 + $0x10] sm:$0xf]
        %v721 = vld [vmem:[#allocation7 + $0x14] sm:$0xf]
        %v722 = vld [vmem:[#allocation7 + $0x18] sm:$0xf]
        %v723 = vld [vmem:[#allocation7 + $0x1c] sm:$0xf]
        %v724 = vld [vmem:[#allocation7 + $0x20] sm:$0xf]
        %v725 = vld [vmem:[#allocation7 + $0x24] sm:$0xf]
        %v726 = vld [vmem:[#allocation7 + $0x28] sm:$0xf]
        %v727 = vld [vmem:[#allocation7 + $0x2c] sm:$0xf]
        %v728 = vld [vmem:[#allocation7 + $0x30] sm:$0xf]
        %v729 = vld [vmem:[#allocation7 + $0x34] sm:$0xf]
        %v730 = vld [vmem:[#allocation7 + $0x38] sm:$0xf]
        %v731 = vld [vmem:[#allocation7 + $0x3c] sm:$0xf]
        %v732 = vld [vmem:[%s4] sm:$0x1]
        %v734 = vlaneseq
        %v735 = vshrl.u32 %v734, 7
        %v736 = vsub.s32 0, %v735
        %v737 = vrot.slane %v732, %v736
        %v755 = vunpack.c.l.b16 %v716
        %v756 = vunpack.c.l.b16 %v717
        %v757 = vunpack.c.l.b16 %v718
        %v758 = vunpack.c.l.b16 %v719
        %v759 = vunpack.c.l.b16 %v720
        %v760 = vunpack.c.l.b16 %v721
        %v761 = vunpack.c.l.b16 %v722
        %v762 = vunpack.c.l.b16 %v723
        %v763 = vunpack.c.l.b16 %v724
        %v764 = vunpack.c.l.b16 %v725
        %v765 = vunpack.c.l.b16 %v726
        %v766 = vunpack.c.l.b16 %v727
        %v767 = vunpack.c.l.b16 %v728
        %v768 = vunpack.c.l.b16 %v729
        %v769 = vunpack.c.l.b16 %v730
        %v770 = vunpack.c.l.b16 %v731
        %v771 = vpack.c.b16 %v756, %v755
        %v772 = vpack.c.b16 %v758, %v757
        %v773 = vpack.c.b16 %v760, %v759
        %v774 = vpack.c.b16 %v762, %v761
        %v775 = vpack.c.b16 %v764, %v763
        %v776 = vpack.c.b16 %v766, %v765
        %v777 = vpack.c.b16 %v768, %v767
        %v778 = vpack.c.b16 %v770, %v769
        %787 = vmatprep.subr.bf16.mxu0 0
        %788 = vmatpush1.bf16.msra.mxu0 %v771
        %789 = vmatprep.subr.bf16.mxu0 0
        %790 = vmatpush1.bf16.msra.mxu0 %v772
        %791 = vmatprep.subr.bf16.mxu0 0
        %792 = vmatpush1.bf16.msra.mxu0 %v773
        %793 = vmatprep.subr.bf16.mxu0 0
        %794 = vmatpush1.bf16.msra.mxu0 %v774
        %795 = vmatprep.subr.bf16.mxu0 0
        %796 = vmatpush1.bf16.msra.mxu0 %v775
        %797 = vmatprep.subr.bf16.mxu0 0
        %798 = vmatpush1.bf16.msra.mxu0 %v776
        %799 = vmatprep.subr.bf16.mxu0 0
        %800 = vmatpush1.bf16.msra.mxu0 %v777
        %801 = vmatprep.subr.bf16.mxu0 0
        %802 = vmatpush1.bf16.msra.mxu0 %v778
        %803 = vmatprep.subr.bf16.mxu0 0
        %804 = vmatpush1.bf16.msra.mxu0 0
        %805 = vmatprep.subr.bf16.mxu0 0
        %806 = vmatpush1.bf16.msra.mxu0 0
        %807 = vmatprep.subr.bf16.mxu0 0
        %808 = vmatpush1.bf16.msra.mxu0 0
        %809 = vmatprep.subr.bf16.mxu0 0
        %810 = vmatpush1.bf16.msra.mxu0 0
        %811 = vmatprep.subr.bf16.mxu0 0
        %812 = vmatpush1.bf16.msra.mxu0 0
        %813 = vmatprep.subr.bf16.mxu0 0
        %814 = vmatpush1.bf16.msra.mxu0 0
        %815 = vmatprep.subr.bf16.mxu0 0
        %816 = vmatpush1.bf16.msra.mxu0 0
        %817 = vmatprep.subr.bf16.mxu0 0
        %818 = vmatpush1.bf16.msra.mxu0 0
        %819 = vmatprep.mubr.bf16.mxu0 0
        %820 = vmatmul.mubr.bf16.gmra.mrb[0].mxu0 %v708
        %v821 = vpop.f32.mrb[0].mxu0
        %v822 = vadd.f32 %v737, %v821
        %v823 = vpop.f32.mrb[0].mxu0
        %v824 = vpop.f32.mrb[0].mxu0
        %v825 = vadd.f32 %v737, %v824
        %v826 = vpop.f32.mrb[0].mxu0
        %827 = vmatprep.mubr.bf16.mxu0 0
        %828 = vmatmul.mubr.bf16.gmra.mrb[0].mxu0 %v709
        %v829 = vpop.f32.mrb[0].mxu0
        %v830 = vadd.f32 %v737, %v829
        %v831 = vpop.f32.mrb[0].mxu0
        %v832 = vpop.f32.mrb[0].mxu0
        %v833 = vadd.f32 %v737, %v832
        %v834 = vpop.f32.mrb[0].mxu0
        %835 = vmatprep.mubr.bf16.mxu0 0
        %836 = vmatmul.mubr.bf16.gmra.mrb[0].mxu0 %v710
        %v837 = vpop.f32.mrb[0].mxu0
        %v838 = vadd.f32 %v737, %v837
        %v839 = vpop.f32.mrb[0].mxu0
        %v840 = vpop.f32.mrb[0].mxu0
        %v841 = vadd.f32 %v737, %v840
        %v842 = vpop.f32.mrb[0].mxu0
        %843 = vmatprep.mubr.bf16.mxu0 0
        %844 = vmatmul.mubr.bf16.gmra.mrb[0].mxu0 %v711
        %v845 = vpop.f32.mrb[0].mxu0
        %v846 = vadd.f32 %v737, %v845
        %v847 = vpop.f32.mrb[0].mxu0
        %v848 = vpop.f32.mrb[0].mxu0
        %v849 = vadd.f32 %v737, %v848
        %v850 = vpop.f32.mrb[0].mxu0
        %851 = vmatprep.mubr.bf16.mxu0 0
        %852 = vmatmul.mubr.bf16.gmra.mrb[0].mxu0 %v712
        %v853 = vpop.f32.mrb[0].mxu0
        %v854 = vadd.f32 %v737, %v853
        %v855 = vpop.f32.mrb[0].mxu0
        %v856 = vpop.f32.mrb[0].mxu0
        %v857 = vadd.f32 %v737, %v856
        %v858 = vpop.f32.mrb[0].mxu0
        %859 = vmatprep.mubr.bf16.mxu0 0
        %860 = vmatmul.mubr.bf16.gmra.mrb[0].mxu0 %v713
        %v861 = vpop.f32.mrb[0].mxu0
        %v862 = vadd.f32 %v737, %v861
        %v863 = vpop.f32.mrb[0].mxu0
        %v864 = vpop.f32.mrb[0].mxu0
        %v865 = vadd.f32 %v737, %v864
        %v866 = vpop.f32.mrb[0].mxu0
        %867 = vmatprep.mubr.bf16.mxu0 0
        %868 = vmatmul.mubr.bf16.gmra.mrb[0].mxu0 %v714
        %v869 = vpop.f32.mrb[0].mxu0
        %v870 = vadd.f32 %v737, %v869
        %v871 = vpop.f32.mrb[0].mxu0
        %v872 = vpop.f32.mrb[0].mxu0
        %v873 = vadd.f32 %v737, %v872
        %v874 = vpop.f32.mrb[0].mxu0
        %875 = vmatprep.mubr.bf16.mxu0 0
        %876 = vmatmul.mubr.bf16.gmra.mrb[0].mxu0 %v715
        %v877 = vpop.f32.mrb[0].mxu0
        %v878 = vadd.f32 %v737, %v877
        %v879 = vpop.f32.mrb[0].mxu0
        %v880 = vpop.f32.mrb[0].mxu0
        %v881 = vadd.f32 %v737, %v880
        %v882 = vpop.f32.mrb[0].mxu0
        %883 = vdwg.mxu0
        %v884 = vmul.f32 %v822, 0.5
        %v885 = vmul.f32 %v825, 0.5
        %v886 = vmul.f32 %v830, 0.5
        %v887 = vmul.f32 %v833, 0.5
        %v888 = vmul.f32 %v838, 0.5
        %v889 = vmul.f32 %v841, 0.5
        %v890 = vmul.f32 %v846, 0.5
        %v891 = vmul.f32 %v849, 0.5
        %v892 = vmul.f32 %v854, 0.5
        %v893 = vmul.f32 %v857, 0.5
        %v894 = vmul.f32 %v862, 0.5
        %v895 = vmul.f32 %v865, 0.5
        %v896 = vmul.f32 %v870, 0.5
        %v897 = vmul.f32 %v873, 0.5
        %v898 = vmul.f32 %v878, 0.5
        %v899 = vmul.f32 %v881, 0.5
        %v900 = vtanh.pop %v884
        %v901 = vtanh.pop %v885
        %v902 = vtanh.pop %v886
        %v903 = vtanh.pop %v887
        %v904 = vtanh.pop %v888
        %v905 = vtanh.pop %v889
        %v906 = vtanh.pop %v890
        %v907 = vtanh.pop %v891
        %v908 = vtanh.pop %v892
        %v909 = vtanh.pop %v893
        %v910 = vtanh.pop %v894
        %v911 = vtanh.pop %v895
        %v912 = vtanh.pop %v896
        %v913 = vtanh.pop %v897
        %v914 = vtanh.pop %v898
        %v915 = vtanh.pop %v899
        %v916 = vadd.f32 %v900, 1.0
        %v917 = vadd.f32 %v901, 1.0
        %v918 = vadd.f32 %v902, 1.0
        %v919 = vadd.f32 %v903, 1.0
        %v920 = vadd.f32 %v904, 1.0
        %v921 = vadd.f32 %v905, 1.0
        %v922 = vadd.f32 %v906, 1.0
        %v923 = vadd.f32 %v907, 1.0
        %v924 = vadd.f32 %v908, 1.0
        %v925 = vadd.f32 %v909, 1.0
        %v926 = vadd.f32 %v910, 1.0
        %v927 = vadd.f32 %v911, 1.0
        %v928 = vadd.f32 %v912, 1.0
        %v929 = vadd.f32 %v913, 1.0
        %v930 = vadd.f32 %v914, 1.0
        %v931 = vadd.f32 %v915, 1.0
        %v932 = vmul.f32 %v884, %v916
        %v933 = vmul.f32 %v885, %v917
        %v934 = vmul.f32 %v886, %v918
        %v935 = vmul.f32 %v887, %v919
        %v936 = vmul.f32 %v888, %v920
        %v937 = vmul.f32 %v889, %v921
        %v938 = vmul.f32 %v890, %v922
        %v939 = vmul.f32 %v891, %v923
        %v940 = vmul.f32 %v892, %v924
        %v941 = vmul.f32 %v893, %v925
        %v942 = vmul.f32 %v894, %v926
        %v943 = vmul.f32 %v895, %v927
        %v944 = vmul.f32 %v896, %v928
        %v945 = vmul.f32 %v897, %v929
        %v946 = vmul.f32 %v898, %v930
        %v947 = vmul.f32 %v899, %v931
        %v948 = vpack.c.bf16 %v933, %v932
        %v949 = vpack.c.bf16 %v935, %v934
        %v950 = vpack.c.bf16 %v937, %v936
        %v951 = vpack.c.bf16 %v939, %v938
        %v952 = vpack.c.bf16 %v941, %v940
        %v953 = vpack.c.bf16 %v943, %v942
        %v954 = vpack.c.bf16 %v945, %v944
        %v955 = vpack.c.bf16 %v947, %v946
        %v956 = vld [vmem:[#allocation8] sm:$0xf]
        %v957 = vld [vmem:[#allocation8 + $0x4] sm:$0xf]
        %v958 = vld [vmem:[#allocation8 + $0x8] sm:$0xf]
        %v959 = vld [vmem:[#allocation8 + $0xc] sm:$0xf]
        %v960 = vld [vmem:[#allocation8 + $0x10] sm:$0xf]
        %v961 = vld [vmem:[#allocation8 + $0x14] sm:$0xf]
        %v962 = vld [vmem:[#allocation8 + $0x18] sm:$0xf]
        %v963 = vld [vmem:[#allocation8 + $0x1c] sm:$0xf]
        %v964 = vld [vmem:[#allocation8 + $0x20] sm:$0xf]
        %v965 = vld [vmem:[#allocation8 + $0x24] sm:$0xf]
        %v966 = vld [vmem:[#allocation8 + $0x28] sm:$0xf]
        %v967 = vld [vmem:[#allocation8 + $0x2c] sm:$0xf]
        %v968 = vld [vmem:[#allocation8 + $0x30] sm:$0xf]
        %v969 = vld [vmem:[#allocation8 + $0x34] sm:$0xf]
        %v970 = vld [vmem:[#allocation8 + $0x38] sm:$0xf]
        %v971 = vld [vmem:[#allocation8 + $0x3c] sm:$0xf]
        %v972 = vld [vmem:[%s6] sm:$0x1]
        %v974 = vlaneseq
        %v975 = vshrl.u32 %v974, 7
        %v976 = vsub.s32 0, %v975
        %v977 = vrot.slane %v972, %v976
        %v995 = vunpack.c.l.b16 %v956
        %v996 = vunpack.c.l.b16 %v957
        %v997 = vunpack.c.l.b16 %v958
        %v998 = vunpack.c.l.b16 %v959
        %v999 = vunpack.c.l.b16 %v960
        %v1000 = vunpack.c.l.b16 %v961
        %v1001 = vunpack.c.l.b16 %v962
        %v1002 = vunpack.c.l.b16 %v963
        %v1003 = vunpack.c.l.b16 %v964
        %v1004 = vunpack.c.l.b16 %v965
        %v1005 = vunpack.c.l.b16 %v966
        %v1006 = vunpack.c.l.b16 %v967
        %v1007 = vunpack.c.l.b16 %v968
        %v1008 = vunpack.c.l.b16 %v969
        %v1009 = vunpack.c.l.b16 %v970
        %v1010 = vunpack.c.l.b16 %v971
        %v1011 = vpack.c.b16 %v996, %v995
        %v1012 = vpack.c.b16 %v998, %v997
        %v1013 = vpack.c.b16 %v1000, %v999
        %v1014 = vpack.c.b16 %v1002, %v1001
        %v1015 = vpack.c.b16 %v1004, %v1003
        %v1016 = vpack.c.b16 %v1006, %v1005
        %v1017 = vpack.c.b16 %v1008, %v1007
        %v1018 = vpack.c.b16 %v1010, %v1009
        %1027 = vmatprep.subr.bf16.mxu0 0
        %1028 = vmatpush1.bf16.msra.mxu0 %v1011
        %1029 = vmatprep.subr.bf16.mxu0 0
        %1030 = vmatpush1.bf16.msra.mxu0 %v1012
        %1031 = vmatprep.subr.bf16.mxu0 0
        %1032 = vmatpush1.bf16.msra.mxu0 %v1013
        %1033 = vmatprep.subr.bf16.mxu0 0
        %1034 = vmatpush1.bf16.msra.mxu0 %v1014
        %1035 = vmatprep.subr.bf16.mxu0 0
        %1036 = vmatpush1.bf16.msra.mxu0 %v1015
        %1037 = vmatprep.subr.bf16.mxu0 0
        %1038 = vmatpush1.bf16.msra.mxu0 %v1016
        %1039 = vmatprep.subr.bf16.mxu0 0
        %1040 = vmatpush1.bf16.msra.mxu0 %v1017
        %1041 = vmatprep.subr.bf16.mxu0 0
        %1042 = vmatpush1.bf16.msra.mxu0 %v1018
        %1043 = vmatprep.subr.bf16.mxu0 0
        %1044 = vmatpush1.bf16.msra.mxu0 0
        %1045 = vmatprep.subr.bf16.mxu0 0
        %1046 = vmatpush1.bf16.msra.mxu0 0
        %1047 = vmatprep.subr.bf16.mxu0 0
        %1048 = vmatpush1.bf16.msra.mxu0 0
        %1049 = vmatprep.subr.bf16.mxu0 0
        %1050 = vmatpush1.bf16.msra.mxu0 0
        %1051 = vmatprep.subr.bf16.mxu0 0
        %1052 = vmatpush1.bf16.msra.mxu0 0
        %1053 = vmatprep.subr.bf16.mxu0 0
        %1054 = vmatpush1.bf16.msra.mxu0 0
        %1055 = vmatprep.subr.bf16.mxu0 0
        %1056 = vmatpush1.bf16.msra.mxu0 0
        %1057 = vmatprep.subr.bf16.mxu0 0
        %1058 = vmatpush1.bf16.msra.mxu0 0
        %1059 = vmatprep.mubr.bf16.mxu0 0
        %1060 = vmatmul.mubr.bf16.gmra.mrb[0].mxu0 %v948
        %v1061 = vpop.f32.mrb[0].mxu0
        %v1062 = vadd.f32 %v977, %v1061
        %v1063 = vpop.f32.mrb[0].mxu0
        %v1064 = vpop.f32.mrb[0].mxu0
        %v1065 = vadd.f32 %v977, %v1064
        %v1066 = vpop.f32.mrb[0].mxu0
        %1067 = vmatprep.mubr.bf16.mxu0 0
        %1068 = vmatmul.mubr.bf16.gmra.mrb[0].mxu0 %v949
        %v1069 = vpop.f32.mrb[0].mxu0
        %v1070 = vadd.f32 %v977, %v1069
        %v1071 = vpop.f32.mrb[0].mxu0
        %v1072 = vpop.f32.mrb[0].mxu0
        %v1073 = vadd.f32 %v977, %v1072
        %v1074 = vpop.f32.mrb[0].mxu0
        %1075 = vmatprep.mubr.bf16.mxu0 0
        %1076 = vmatmul.mubr.bf16.gmra.mrb[0].mxu0 %v950
        %v1077 = vpop.f32.mrb[0].mxu0
        %v1078 = vadd.f32 %v977, %v1077
        %v1079 = vpop.f32.mrb[0].mxu0
        %v1080 = vpop.f32.mrb[0].mxu0
        %v1081 = vadd.f32 %v977, %v1080
        %v1082 = vpop.f32.mrb[0].mxu0
        %1083 = vmatprep.mubr.bf16.mxu0 0
        %1084 = vmatmul.mubr.bf16.gmra.mrb[0].mxu0 %v951
        %v1085 = vpop.f32.mrb[0].mxu0
        %v1086 = vadd.f32 %v977, %v1085
        %v1087 = vpop.f32.mrb[0].mxu0
        %v1088 = vpop.f32.mrb[0].mxu0
        %v1089 = vadd.f32 %v977, %v1088
        %v1090 = vpop.f32.mrb[0].mxu0
        %1091 = vmatprep.mubr.bf16.mxu0 0
        %1092 = vmatmul.mubr.bf16.gmra.mrb[0].mxu0 %v952
        %v1093 = vpop.f32.mrb[0].mxu0
        %v1094 = vadd.f32 %v977, %v1093
        %v1095 = vpop.f32.mrb[0].mxu0
        %v1096 = vpop.f32.mrb[0].mxu0
        %v1097 = vadd.f32 %v977, %v1096
        %v1098 = vpop.f32.mrb[0].mxu0
        %1099 = vmatprep.mubr.bf16.mxu0 0
        %1100 = vmatmul.mubr.bf16.gmra.mrb[0].mxu0 %v953
        %v1101 = vpop.f32.mrb[0].mxu0
        %v1102 = vadd.f32 %v977, %v1101
        %v1103 = vpop.f32.mrb[0].mxu0
        %v1104 = vpop.f32.mrb[0].mxu0
        %v1105 = vadd.f32 %v977, %v1104
        %v1106 = vpop.f32.mrb[0].mxu0
        %1107 = vmatprep.mubr.bf16.mxu0 0
        %1108 = vmatmul.mubr.bf16.gmra.mrb[0].mxu0 %v954
        %v1109 = vpop.f32.mrb[0].mxu0
        %v1110 = vadd.f32 %v977, %v1109
        %v1111 = vpop.f32.mrb[0].mxu0
        %v1112 = vpop.f32.mrb[0].mxu0
        %v1113 = vadd.f32 %v977, %v1112
        %v1114 = vpop.f32.mrb[0].mxu0
        %1115 = vmatprep.mubr.bf16.mxu0 0
        %1116 = vmatmul.mubr.bf16.gmra.mrb[0].mxu0 %v955
        %v1117 = vpop.f32.mrb[0].mxu0
        %v1118 = vadd.f32 %v977, %v1117
        %v1119 = vpop.f32.mrb[0].mxu0
        %v1120 = vpop.f32.mrb[0].mxu0
        %v1121 = vadd.f32 %v977, %v1120
        %v1122 = vpop.f32.mrb[0].mxu0
        %1123 = vdwg.mxu0
        %v1124 = vadd.f32 %v582, %v1062
        %v1125 = vadd.f32 %v585, %v1065
        %v1126 = vadd.f32 %v590, %v1070
        %v1127 = vadd.f32 %v593, %v1073
        %v1128 = vadd.f32 %v598, %v1078
        %v1129 = vadd.f32 %v601, %v1081
        %v1130 = vadd.f32 %v606, %v1086
        %v1131 = vadd.f32 %v609, %v1089
        %v1132 = vadd.f32 %v614, %v1094
        %v1133 = vadd.f32 %v617, %v1097
        %v1134 = vadd.f32 %v622, %v1102
        %v1135 = vadd.f32 %v625, %v1105
        %v1136 = vadd.f32 %v630, %v1110
        %v1137 = vadd.f32 %v633, %v1113
        %v1138 = vadd.f32 %v638, %v1118
        %v1139 = vadd.f32 %v641, %v1121
        %v1140 = vmul.f32 %v1124, 0.5
        %v1141 = vmul.f32 %v1125, 0.5
        %v1142 = vmul.f32 %v1126, 0.5
        %v1143 = vmul.f32 %v1127, 0.5
        %v1144 = vmul.f32 %v1128, 0.5
        %v1145 = vmul.f32 %v1129, 0.5
        %v1146 = vmul.f32 %v1130, 0.5
        %v1147 = vmul.f32 %v1131, 0.5
        %v1148 = vmul.f32 %v1132, 0.5
        %v1149 = vmul.f32 %v1133, 0.5
        %v1150 = vmul.f32 %v1134, 0.5
        %v1151 = vmul.f32 %v1135, 0.5
        %v1152 = vmul.f32 %v1136, 0.5
        %v1153 = vmul.f32 %v1137, 0.5
        %v1154 = vmul.f32 %v1138, 0.5
        %v1155 = vmul.f32 %v1139, 0.5
        %v1156 = vtanh.pop %v1140
        %v1157 = vtanh.pop %v1141
        %v1158 = vtanh.pop %v1142
        %v1159 = vtanh.pop %v1143
        %v1160 = vtanh.pop %v1144
        %v1161 = vtanh.pop %v1145
        %v1162 = vtanh.pop %v1146
        %v1163 = vtanh.pop %v1147
        %v1164 = vtanh.pop %v1148
        %v1165 = vtanh.pop %v1149
        %v1166 = vtanh.pop %v1150
        %v1167 = vtanh.pop %v1151
        %v1168 = vtanh.pop %v1152
        %v1169 = vtanh.pop %v1153
        %v1170 = vtanh.pop %v1154
        %v1171 = vtanh.pop %v1155
        %v1172 = vadd.f32 %v1156, 1.0
        %v1173 = vadd.f32 %v1157, 1.0
        %v1174 = vadd.f32 %v1158, 1.0
        %v1175 = vadd.f32 %v1159, 1.0
        %v1176 = vadd.f32 %v1160, 1.0
        %v1177 = vadd.f32 %v1161, 1.0
        %v1178 = vadd.f32 %v1162, 1.0
        %v1179 = vadd.f32 %v1163, 1.0
        %v1180 = vadd.f32 %v1164, 1.0
        %v1181 = vadd.f32 %v1165, 1.0
        %v1182 = vadd.f32 %v1166, 1.0
        %v1183 = vadd.f32 %v1167, 1.0
        %v1184 = vadd.f32 %v1168, 1.0
        %v1185 = vadd.f32 %v1169, 1.0
        %v1186 = vadd.f32 %v1170, 1.0
        %v1187 = vadd.f32 %v1171, 1.0
        %v1188 = vmul.f32 %v1140, %v1172
        %v1189 = vmul.f32 %v1141, %v1173
        %v1190 = vmul.f32 %v1142, %v1174
        %v1191 = vmul.f32 %v1143, %v1175
        %v1192 = vmul.f32 %v1144, %v1176
        %v1193 = vmul.f32 %v1145, %v1177
        %v1194 = vmul.f32 %v1146, %v1178
        %v1195 = vmul.f32 %v1147, %v1179
        %v1196 = vmul.f32 %v1148, %v1180
        %v1197 = vmul.f32 %v1149, %v1181
        %v1198 = vmul.f32 %v1150, %v1182
        %v1199 = vmul.f32 %v1151, %v1183
        %v1200 = vmul.f32 %v1152, %v1184
        %v1201 = vmul.f32 %v1153, %v1185
        %v1202 = vmul.f32 %v1154, %v1186
        %v1203 = vmul.f32 %v1155, %v1187
        %v1204 = vpack.c.bf16 %v1189, %v1188
        %v1205 = vpack.c.bf16 %v1191, %v1190
        %v1206 = vpack.c.bf16 %v1193, %v1192
        %v1207 = vpack.c.bf16 %v1195, %v1194
        %v1208 = vpack.c.bf16 %v1197, %v1196
        %v1209 = vpack.c.bf16 %v1199, %v1198
        %v1210 = vpack.c.bf16 %v1201, %v1200
        %v1211 = vpack.c.bf16 %v1203, %v1202
        %s1212 = scalar_lea.vmem [#allocation7], 64
        %v1213 = vld [vmem:[%s1212] sm:$0xf]
        %v1214 = vld [vmem:[%s1212 + $0x4] sm:$0xf]
        %v1215 = vld [vmem:[%s1212 + $0x8] sm:$0xf]
        %v1216 = vld [vmem:[%s1212 + $0xc] sm:$0xf]
        %v1217 = vld [vmem:[%s1212 + $0x10] sm:$0xf]
        %v1218 = vld [vmem:[%s1212 + $0x14] sm:$0xf]
        %v1219 = vld [vmem:[%s1212 + $0x18] sm:$0xf]
        %v1220 = vld [vmem:[%s1212 + $0x1c] sm:$0xf]
        %v1221 = vld [vmem:[%s1212 + $0x20] sm:$0xf]
        %v1222 = vld [vmem:[%s1212 + $0x24] sm:$0xf]
        %v1223 = vld [vmem:[%s1212 + $0x28] sm:$0xf]
        %v1224 = vld [vmem:[%s1212 + $0x2c] sm:$0xf]
        %v1225 = vld [vmem:[%s1212 + $0x30] sm:$0xf]
        %v1226 = vld [vmem:[%s1212 + $0x34] sm:$0xf]
        %v1227 = vld [vmem:[%s1212 + $0x38] sm:$0xf]
        %v1228 = vld [vmem:[%s1212 + $0x3c] sm:$0xf]
        %s1229 = scalar_lea.vmem %s4, 1
        %v1230 = vld [vmem:[%s1229] sm:$0x1]
        %v1232 = vlaneseq
        %v1233 = vshrl.u32 %v1232, 7
        %v1234 = vsub.s32 0, %v1233
        %v1235 = vrot.slane %v1230, %v1234
        %v1253 = vunpack.c.l.b16 %v1213
        %v1254 = vunpack.c.l.b16 %v1214
        %v1255 = vunpack.c.l.b16 %v1215
        %v1256 = vunpack.c.l.b16 %v1216
        %v1257 = vunpack.c.l.b16 %v1217
        %v1258 = vunpack.c.l.b16 %v1218
        %v1259 = vunpack.c.l.b16 %v1219
        %v1260 = vunpack.c.l.b16 %v1220
        %v1261 = vunpack.c.l.b16 %v1221
        %v1262 = vunpack.c.l.b16 %v1222
        %v1263 = vunpack.c.l.b16 %v1223
        %v1264 = vunpack.c.l.b16 %v1224
        %v1265 = vunpack.c.l.b16 %v1225
        %v1266 = vunpack.c.l.b16 %v1226
        %v1267 = vunpack.c.l.b16 %v1227
        %v1268 = vunpack.c.l.b16 %v1228
        %v1269 = vpack.c.b16 %v1254, %v1253
        %v1270 = vpack.c.b16 %v1256, %v1255
        %v1271 = vpack.c.b16 %v1258, %v1257
        %v1272 = vpack.c.b16 %v1260, %v1259
        %v1273 = vpack.c.b16 %v1262, %v1261
        %v1274 = vpack.c.b16 %v1264, %v1263
        %v1275 = vpack.c.b16 %v1266, %v1265
        %v1276 = vpack.c.b16 %v1268, %v1267
        %1285 = vmatprep.subr.bf16.mxu0 0
        %1286 = vmatpush1.bf16.msra.mxu0 %v1269
        %1287 = vmatprep.subr.bf16.mxu0 0
        %1288 = vmatpush1.bf16.msra.mxu0 %v1270
        %1289 = vmatprep.subr.bf16.mxu0 0
        %1290 = vmatpush1.bf16.msra.mxu0 %v1271
        %1291 = vmatprep.subr.bf16.mxu0 0
        %1292 = vmatpush1.bf16.msra.mxu0 %v1272
        %1293 = vmatprep.subr.bf16.mxu0 0
        %1294 = vmatpush1.bf16.msra.mxu0 %v1273
        %1295 = vmatprep.subr.bf16.mxu0 0
        %1296 = vmatpush1.bf16.msra.mxu0 %v1274
        %1297 = vmatprep.subr.bf16.mxu0 0
        %1298 = vmatpush1.bf16.msra.mxu0 %v1275
        %1299 = vmatprep.subr.bf16.mxu0 0
        %1300 = vmatpush1.bf16.msra.mxu0 %v1276
        %1301 = vmatprep.subr.bf16.mxu0 0
        %1302 = vmatpush1.bf16.msra.mxu0 0
        %1303 = vmatprep.subr.bf16.mxu0 0
        %1304 = vmatpush1.bf16.msra.mxu0 0
        %1305 = vmatprep.subr.bf16.mxu0 0
        %1306 = vmatpush1.bf16.msra.mxu0 0
        %1307 = vmatprep.subr.bf16.mxu0 0
        %1308 = vmatpush1.bf16.msra.mxu0 0
        %1309 = vmatprep.subr.bf16.mxu0 0
        %1310 = vmatpush1.bf16.msra.mxu0 0
        %1311 = vmatprep.subr.bf16.mxu0 0
        %1312 = vmatpush1.bf16.msra.mxu0 0
        %1313 = vmatprep.subr.bf16.mxu0 0
        %1314 = vmatpush1.bf16.msra.mxu0 0
        %1315 = vmatprep.subr.bf16.mxu0 0
        %1316 = vmatpush1.bf16.msra.mxu0 0
        %1317 = vmatprep.mubr.bf16.mxu0 0
        %1318 = vmatmul.mubr.bf16.gmra.mrb[0].mxu0 %v1204
        %v1319 = vpop.f32.mrb[0].mxu0
        %v1320 = vadd.f32 %v1235, %v1319
        %v1321 = vpop.f32.mrb[0].mxu0
        %v1322 = vpop.f32.mrb[0].mxu0
        %v1323 = vadd.f32 %v1235, %v1322
        %v1324 = vpop.f32.mrb[0].mxu0
        %1325 = vmatprep.mubr.bf16.mxu0 0
        %1326 = vmatmul.mubr.bf16.gmra.mrb[0].mxu0 %v1205
        %v1327 = vpop.f32.mrb[0].mxu0
        %v1328 = vadd.f32 %v1235, %v1327
        %v1329 = vpop.f32.mrb[0].mxu0
        %v1330 = vpop.f32.mrb[0].mxu0
        %v1331 = vadd.f32 %v1235, %v1330
        %v1332 = vpop.f32.mrb[0].mxu0
        %1333 = vmatprep.mubr.bf16.mxu0 0
        %1334 = vmatmul.mubr.bf16.gmra.mrb[0].mxu0 %v1206
        %v1335 = vpop.f32.mrb[0].mxu0
        %v1336 = vadd.f32 %v1235, %v1335
        %v1337 = vpop.f32.mrb[0].mxu0
        %v1338 = vpop.f32.mrb[0].mxu0
        %v1339 = vadd.f32 %v1235, %v1338
        %v1340 = vpop.f32.mrb[0].mxu0
        %1341 = vmatprep.mubr.bf16.mxu0 0
        %1342 = vmatmul.mubr.bf16.gmra.mrb[0].mxu0 %v1207
        %v1343 = vpop.f32.mrb[0].mxu0
        %v1344 = vadd.f32 %v1235, %v1343
        %v1345 = vpop.f32.mrb[0].mxu0
        %v1346 = vpop.f32.mrb[0].mxu0
        %v1347 = vadd.f32 %v1235, %v1346
        %v1348 = vpop.f32.mrb[0].mxu0
        %1349 = vmatprep.mubr.bf16.mxu0 0
        %1350 = vmatmul.mubr.bf16.gmra.mrb[0].mxu0 %v1208
        %v1351 = vpop.f32.mrb[0].mxu0
        %v1352 = vadd.f32 %v1235, %v1351
        %v1353 = vpop.f32.mrb[0].mxu0
        %v1354 = vpop.f32.mrb[0].mxu0
        %v1355 = vadd.f32 %v1235, %v1354
        %v1356 = vpop.f32.mrb[0].mxu0
        %1357 = vmatprep.mubr.bf16.mxu0 0
        %1358 = vmatmul.mubr.bf16.gmra.mrb[0].mxu0 %v1209
        %v1359 = vpop.f32.mrb[0].mxu0
        %v1360 = vadd.f32 %v1235, %v1359
        %v1361 = vpop.f32.mrb[0].mxu0
        %v1362 = vpop.f32.mrb[0].mxu0
        %v1363 = vadd.f32 %v1235, %v1362
        %v1364 = vpop.f32.mrb[0].mxu0
        %1365 = vmatprep.mubr.bf16.mxu0 0
        %1366 = vmatmul.mubr.bf16.gmra.mrb[0].mxu0 %v1210
        %v1367 = vpop.f32.mrb[0].mxu0
        %v1368 = vadd.f32 %v1235, %v1367
        %v1369 = vpop.f32.mrb[0].mxu0
        %v1370 = vpop.f32.mrb[0].mxu0
        %v1371 = vadd.f32 %v1235, %v1370
        %v1372 = vpop.f32.mrb[0].mxu0
        %1373 = vmatprep.mubr.bf16.mxu0 0
        %1374 = vmatmul.mubr.bf16.gmra.mrb[0].mxu0 %v1211
        %v1375 = vpop.f32.mrb[0].mxu0
        %v1376 = vadd.f32 %v1235, %v1375
        %v1377 = vpop.f32.mrb[0].mxu0
        %v1378 = vpop.f32.mrb[0].mxu0
        %v1379 = vadd.f32 %v1235, %v1378
        %v1380 = vpop.f32.mrb[0].mxu0
        %1381 = vdwg.mxu0
        %v1382 = vmul.f32 %v1320, 0.5
        %v1383 = vmul.f32 %v1323, 0.5
        %v1384 = vmul.f32 %v1328, 0.5
        %v1385 = vmul.f32 %v1331, 0.5
        %v1386 = vmul.f32 %v1336, 0.5
        %v1387 = vmul.f32 %v1339, 0.5
        %v1388 = vmul.f32 %v1344, 0.5
        %v1389 = vmul.f32 %v1347, 0.5
        %v1390 = vmul.f32 %v1352, 0.5
        %v1391 = vmul.f32 %v1355, 0.5
        %v1392 = vmul.f32 %v1360, 0.5
        %v1393 = vmul.f32 %v1363, 0.5
        %v1394 = vmul.f32 %v1368, 0.5
        %v1395 = vmul.f32 %v1371, 0.5
        %v1396 = vmul.f32 %v1376, 0.5
        %v1397 = vmul.f32 %v1379, 0.5
        %v1398 = vtanh.pop %v1382
        %v1399 = vtanh.pop %v1383
        %v1400 = vtanh.pop %v1384
        %v1401 = vtanh.pop %v1385
        %v1402 = vtanh.pop %v1386
        %v1403 = vtanh.pop %v1387
        %v1404 = vtanh.pop %v1388
        %v1405 = vtanh.pop %v1389
        %v1406 = vtanh.pop %v1390
        %v1407 = vtanh.pop %v1391
        %v1408 = vtanh.pop %v1392
        %v1409 = vtanh.pop %v1393
        %v1410 = vtanh.pop %v1394
        %v1411 = vtanh.pop %v1395
        %v1412 = vtanh.pop %v1396
        %v1413 = vtanh.pop %v1397
        %v1414 = vadd.f32 %v1398, 1.0
        %v1415 = vadd.f32 %v1399, 1.0
        %v1416 = vadd.f32 %v1400, 1.0
        %v1417 = vadd.f32 %v1401, 1.0
        %v1418 = vadd.f32 %v1402, 1.0
        %v1419 = vadd.f32 %v1403, 1.0
        %v1420 = vadd.f32 %v1404, 1.0
        %v1421 = vadd.f32 %v1405, 1.0
        %v1422 = vadd.f32 %v1406, 1.0
        %v1423 = vadd.f32 %v1407, 1.0
        %v1424 = vadd.f32 %v1408, 1.0
        %v1425 = vadd.f32 %v1409, 1.0
        %v1426 = vadd.f32 %v1410, 1.0
        %v1427 = vadd.f32 %v1411, 1.0
        %v1428 = vadd.f32 %v1412, 1.0
        %v1429 = vadd.f32 %v1413, 1.0
        %v1430 = vmul.f32 %v1382, %v1414
        %v1431 = vmul.f32 %v1383, %v1415
        %v1432 = vmul.f32 %v1384, %v1416
        %v1433 = vmul.f32 %v1385, %v1417
        %v1434 = vmul.f32 %v1386, %v1418
        %v1435 = vmul.f32 %v1387, %v1419
        %v1436 = vmul.f32 %v1388, %v1420
        %v1437 = vmul.f32 %v1389, %v1421
        %v1438 = vmul.f32 %v1390, %v1422
        %v1439 = vmul.f32 %v1391, %v1423
        %v1440 = vmul.f32 %v1392, %v1424
        %v1441 = vmul.f32 %v1393, %v1425
        %v1442 = vmul.f32 %v1394, %v1426
        %v1443 = vmul.f32 %v1395, %v1427
        %v1444 = vmul.f32 %v1396, %v1428
        %v1445 = vmul.f32 %v1397, %v1429
        %v1446 = vpack.c.bf16 %v1431, %v1430
        %v1447 = vpack.c.bf16 %v1433, %v1432
        %v1448 = vpack.c.bf16 %v1435, %v1434
        %v1449 = vpack.c.bf16 %v1437, %v1436
        %v1450 = vpack.c.bf16 %v1439, %v1438
        %v1451 = vpack.c.bf16 %v1441, %v1440
        %v1452 = vpack.c.bf16 %v1443, %v1442
        %v1453 = vpack.c.bf16 %v1445, %v1444
        %s1454 = scalar_lea.vmem [#allocation8], 64
        %v1455 = vld [vmem:[%s1454] sm:$0xf]
        %v1456 = vld [vmem:[%s1454 + $0x4] sm:$0xf]
        %v1457 = vld [vmem:[%s1454 + $0x8] sm:$0xf]
        %v1458 = vld [vmem:[%s1454 + $0xc] sm:$0xf]
        %v1459 = vld [vmem:[%s1454 + $0x10] sm:$0xf]
        %v1460 = vld [vmem:[%s1454 + $0x14] sm:$0xf]
        %v1461 = vld [vmem:[%s1454 + $0x18] sm:$0xf]
        %v1462 = vld [vmem:[%s1454 + $0x1c] sm:$0xf]
        %v1463 = vld [vmem:[%s1454 + $0x20] sm:$0xf]
        %v1464 = vld [vmem:[%s1454 + $0x24] sm:$0xf]
        %v1465 = vld [vmem:[%s1454 + $0x28] sm:$0xf]
        %v1466 = vld [vmem:[%s1454 + $0x2c] sm:$0xf]
        %v1467 = vld [vmem:[%s1454 + $0x30] sm:$0xf]
        %v1468 = vld [vmem:[%s1454 + $0x34] sm:$0xf]
        %v1469 = vld [vmem:[%s1454 + $0x38] sm:$0xf]
        %v1470 = vld [vmem:[%s1454 + $0x3c] sm:$0xf]
        %s1471 = scalar_lea.vmem %s6, 1
        %v1472 = vld [vmem:[%s1471] sm:$0x1]
        %v1474 = vlaneseq
        %v1475 = vshrl.u32 %v1474, 7
        %v1476 = vsub.s32 0, %v1475
        %v1477 = vrot.slane %v1472, %v1476
        %v1495 = vunpack.c.l.b16 %v1455
        %v1496 = vunpack.c.l.b16 %v1456
        %v1497 = vunpack.c.l.b16 %v1457
        %v1498 = vunpack.c.l.b16 %v1458
        %v1499 = vunpack.c.l.b16 %v1459
        %v1500 = vunpack.c.l.b16 %v1460
        %v1501 = vunpack.c.l.b16 %v1461
        %v1502 = vunpack.c.l.b16 %v1462
        %v1503 = vunpack.c.l.b16 %v1463
        %v1504 = vunpack.c.l.b16 %v1464
        %v1505 = vunpack.c.l.b16 %v1465
        %v1506 = vunpack.c.l.b16 %v1466
        %v1507 = vunpack.c.l.b16 %v1467
        %v1508 = vunpack.c.l.b16 %v1468
        %v1509 = vunpack.c.l.b16 %v1469
        %v1510 = vunpack.c.l.b16 %v1470
        %v1511 = vpack.c.b16 %v1496, %v1495
        %v1512 = vpack.c.b16 %v1498, %v1497
        %v1513 = vpack.c.b16 %v1500, %v1499
        %v1514 = vpack.c.b16 %v1502, %v1501
        %v1515 = vpack.c.b16 %v1504, %v1503
        %v1516 = vpack.c.b16 %v1506, %v1505
        %v1517 = vpack.c.b16 %v1508, %v1507
        %v1518 = vpack.c.b16 %v1510, %v1509
        %1527 = vmatprep.subr.bf16.mxu0 0
        %1528 = vmatpush1.bf16.msra.mxu0 %v1511
        %1529 = vmatprep.subr.bf16.mxu0 0
        %1530 = vmatpush1.bf16.msra.mxu0 %v1512
        %1531 = vmatprep.subr.bf16.mxu0 0
        %1532 = vmatpush1.bf16.msra.mxu0 %v1513
        %1533 = vmatprep.subr.bf16.mxu0 0
        %1534 = vmatpush1.bf16.msra.mxu0 %v1514
        %1535 = vmatprep.subr.bf16.mxu0 0
        %1536 = vmatpush1.bf16.msra.mxu0 %v1515
        %1537 = vmatprep.subr.bf16.mxu0 0
        %1538 = vmatpush1.bf16.msra.mxu0 %v1516
        %1539 = vmatprep.subr.bf16.mxu0 0
        %1540 = vmatpush1.bf16.msra.mxu0 %v1517
        %1541 = vmatprep.subr.bf16.mxu0 0
        %1542 = vmatpush1.bf16.msra.mxu0 %v1518
        %1543 = vmatprep.subr.bf16.mxu0 0
        %1544 = vmatpush1.bf16.msra.mxu0 0
        %1545 = vmatprep.subr.bf16.mxu0 0
        %1546 = vmatpush1.bf16.msra.mxu0 0
        %1547 = vmatprep.subr.bf16.mxu0 0
        %1548 = vmatpush1.bf16.msra.mxu0 0
        %1549 = vmatprep.subr.bf16.mxu0 0
        %1550 = vmatpush1.bf16.msra.mxu0 0
        %1551 = vmatprep.subr.bf16.mxu0 0
        %1552 = vmatpush1.bf16.msra.mxu0 0
        %1553 = vmatprep.subr.bf16.mxu0 0
        %1554 = vmatpush1.bf16.msra.mxu0 0
        %1555 = vmatprep.subr.bf16.mxu0 0
        %1556 = vmatpush1.bf16.msra.mxu0 0
        %1557 = vmatprep.subr.bf16.mxu0 0
        %1558 = vmatpush1.bf16.msra.mxu0 0
        %1559 = vmatprep.mubr.bf16.mxu0 0
        %1560 = vmatmul.mubr.bf16.gmra.mrb[0].mxu0 %v1446
        %v1561 = vpop.f32.mrb[0].mxu0
        %v1562 = vadd.f32 %v1477, %v1561
        %v1563 = vpop.f32.mrb[0].mxu0
        %v1564 = vpop.f32.mrb[0].mxu0
        %v1565 = vadd.f32 %v1477, %v1564
        %v1566 = vpop.f32.mrb[0].mxu0
        %1567 = vmatprep.mubr.bf16.mxu0 0
        %1568 = vmatmul.mubr.bf16.gmra.mrb[0].mxu0 %v1447
        %v1569 = vpop.f32.mrb[0].mxu0
        %v1570 = vadd.f32 %v1477, %v1569
        %v1571 = vpop.f32.mrb[0].mxu0
        %v1572 = vpop.f32.mrb[0].mxu0
        %v1573 = vadd.f32 %v1477, %v1572
        %v1574 = vpop.f32.mrb[0].mxu0
        %1575 = vmatprep.mubr.bf16.mxu0 0
        %1576 = vmatmul.mubr.bf16.gmra.mrb[0].mxu0 %v1448
        %v1577 = vpop.f32.mrb[0].mxu0
        %v1578 = vadd.f32 %v1477, %v1577
        %v1579 = vpop.f32.mrb[0].mxu0
        %v1580 = vpop.f32.mrb[0].mxu0
        %v1581 = vadd.f32 %v1477, %v1580
        %v1582 = vpop.f32.mrb[0].mxu0
        %1583 = vmatprep.mubr.bf16.mxu0 0
        %1584 = vmatmul.mubr.bf16.gmra.mrb[0].mxu0 %v1449
        %v1585 = vpop.f32.mrb[0].mxu0
        %v1586 = vadd.f32 %v1477, %v1585
        %v1587 = vpop.f32.mrb[0].mxu0
        %v1588 = vpop.f32.mrb[0].mxu0
        %v1589 = vadd.f32 %v1477, %v1588
        %v1590 = vpop.f32.mrb[0].mxu0
        %1591 = vmatprep.mubr.bf16.mxu0 0
        %1592 = vmatmul.mubr.bf16.gmra.mrb[0].mxu0 %v1450
        %v1593 = vpop.f32.mrb[0].mxu0
        %v1594 = vadd.f32 %v1477, %v1593
        %v1595 = vpop.f32.mrb[0].mxu0
        %v1596 = vpop.f32.mrb[0].mxu0
        %v1597 = vadd.f32 %v1477, %v1596
        %v1598 = vpop.f32.mrb[0].mxu0
        %1599 = vmatprep.mubr.bf16.mxu0 0
        %1600 = vmatmul.mubr.bf16.gmra.mrb[0].mxu0 %v1451
        %v1601 = vpop.f32.mrb[0].mxu0
        %v1602 = vadd.f32 %v1477, %v1601
        %v1603 = vpop.f32.mrb[0].mxu0
        %v1604 = vpop.f32.mrb[0].mxu0
        %v1605 = vadd.f32 %v1477, %v1604
        %v1606 = vpop.f32.mrb[0].mxu0
        %1607 = vmatprep.mubr.bf16.mxu0 0
        %1608 = vmatmul.mubr.bf16.gmra.mrb[0].mxu0 %v1452
        %v1609 = vpop.f32.mrb[0].mxu0
        %v1610 = vadd.f32 %v1477, %v1609
        %v1611 = vpop.f32.mrb[0].mxu0
        %v1612 = vpop.f32.mrb[0].mxu0
        %v1613 = vadd.f32 %v1477, %v1612
        %v1614 = vpop.f32.mrb[0].mxu0
        %1615 = vmatprep.mubr.bf16.mxu0 0
        %1616 = vmatmul.mubr.bf16.gmra.mrb[0].mxu0 %v1453
        %v1617 = vpop.f32.mrb[0].mxu0
        %v1618 = vadd.f32 %v1477, %v1617
        %v1619 = vpop.f32.mrb[0].mxu0
        %v1620 = vpop.f32.mrb[0].mxu0
        %v1621 = vadd.f32 %v1477, %v1620
        %v1622 = vpop.f32.mrb[0].mxu0
        %1623 = vdwg.mxu0
        %v1624 = vadd.f32 %v1124, %v1562
        %v1625 = vadd.f32 %v1125, %v1565
        %v1626 = vadd.f32 %v1126, %v1570
        %v1627 = vadd.f32 %v1127, %v1573
        %v1628 = vadd.f32 %v1128, %v1578
        %v1629 = vadd.f32 %v1129, %v1581
        %v1630 = vadd.f32 %v1130, %v1586
        %v1631 = vadd.f32 %v1131, %v1589
        %v1632 = vadd.f32 %v1132, %v1594
        %v1633 = vadd.f32 %v1133, %v1597
        %v1634 = vadd.f32 %v1134, %v1602
        %v1635 = vadd.f32 %v1135, %v1605
        %v1636 = vadd.f32 %v1136, %v1610
        %v1637 = vadd.f32 %v1137, %v1613
        %v1638 = vadd.f32 %v1138, %v1618
        %v1639 = vadd.f32 %v1139, %v1621
        %v1640 = vpack.c.bf16 %v1625, %v1624
        %v1641 = vpack.c.bf16 %v1627, %v1626
        %v1642 = vpack.c.bf16 %v1629, %v1628
        %v1643 = vpack.c.bf16 %v1631, %v1630
        %v1644 = vpack.c.bf16 %v1633, %v1632
        %v1645 = vpack.c.bf16 %v1635, %v1634
        %v1646 = vpack.c.bf16 %v1637, %v1636
        %v1647 = vpack.c.bf16 %v1639, %v1638
        %v1648 = vld [vmem:[#allocation10] sm:$0xf]
        %v1649 = vld [vmem:[#allocation10 + $0x4] sm:$0xf]
        %v1650 = vld [vmem:[#allocation10 + $0x8] sm:$0xf]
        %v1651 = vld [vmem:[#allocation10 + $0xc] sm:$0xf]
        %v1652 = vld [vmem:[#allocation10 + $0x10] sm:$0xf]
        %v1653 = vld [vmem:[#allocation10 + $0x14] sm:$0xf]
        %v1654 = vld [vmem:[#allocation10 + $0x18] sm:$0xf]
        %v1655 = vld [vmem:[#allocation10 + $0x1c] sm:$0xf]
        %v1656 = vld [vmem:[#allocation10 + $0x20] sm:$0xf]
        %v1657 = vld [vmem:[#allocation10 + $0x24] sm:$0xf]
        %v1658 = vld [vmem:[#allocation10 + $0x28] sm:$0xf]
        %v1659 = vld [vmem:[#allocation10 + $0x2c] sm:$0xf]
        %v1660 = vld [vmem:[#allocation10 + $0x30] sm:$0xf]
        %v1661 = vld [vmem:[#allocation10 + $0x34] sm:$0xf]
        %v1662 = vld [vmem:[#allocation10 + $0x38] sm:$0xf]
        %v1663 = vld [vmem:[#allocation10 + $0x3c] sm:$0xf]
        %v1664 = vld [vmem:[%s8] sm:$0x1]
        %v1666 = vlaneseq
        %v1667 = vshrl.u32 %v1666, 7
        %v1668 = vsub.s32 0, %v1667
        %v1669 = vrot.slane %v1664, %v1668
        %v1687 = vunpack.c.l.b16 %v1648
        %v1688 = vunpack.c.l.b16 %v1649
        %v1689 = vunpack.c.l.b16 %v1650
        %v1690 = vunpack.c.l.b16 %v1651
        %v1691 = vunpack.c.l.b16 %v1652
        %v1692 = vunpack.c.l.b16 %v1653
        %v1693 = vunpack.c.l.b16 %v1654
        %v1694 = vunpack.c.l.b16 %v1655
        %v1695 = vunpack.c.l.b16 %v1656
        %v1696 = vunpack.c.l.b16 %v1657
        %v1697 = vunpack.c.l.b16 %v1658
        %v1698 = vunpack.c.l.b16 %v1659
        %v1699 = vunpack.c.l.b16 %v1660
        %v1700 = vunpack.c.l.b16 %v1661
        %v1701 = vunpack.c.l.b16 %v1662
        %v1702 = vunpack.c.l.b16 %v1663
        %v1703 = vpack.c.b16 %v1688, %v1687
        %v1704 = vpack.c.b16 %v1690, %v1689
        %v1705 = vpack.c.b16 %v1692, %v1691
        %v1706 = vpack.c.b16 %v1694, %v1693
        %v1707 = vpack.c.b16 %v1696, %v1695
        %v1708 = vpack.c.b16 %v1698, %v1697
        %v1709 = vpack.c.b16 %v1700, %v1699
        %v1710 = vpack.c.b16 %v1702, %v1701
        %1719 = vmatprep.subr.bf16.mxu0 0
        %1720 = vmatpush1.bf16.msra.mxu0 %v1703
        %1721 = vmatprep.subr.bf16.mxu0 0
        %1722 = vmatpush1.bf16.msra.mxu0 %v1704
        %1723 = vmatprep.subr.bf16.mxu0 0
        %1724 = vmatpush1.bf16.msra.mxu0 %v1705
        %1725 = vmatprep.subr.bf16.mxu0 0
        %1726 = vmatpush1.bf16.msra.mxu0 %v1706
        %1727 = vmatprep.subr.bf16.mxu0 0
        %1728 = vmatpush1.bf16.msra.mxu0 %v1707
        %1729 = vmatprep.subr.bf16.mxu0 0
        %1730 = vmatpush1.bf16.msra.mxu0 %v1708
        %1731 = vmatprep.subr.bf16.mxu0 0
        %1732 = vmatpush1.bf16.msra.mxu0 %v1709
        %1733 = vmatprep.subr.bf16.mxu0 0
        %1734 = vmatpush1.bf16.msra.mxu0 %v1710
        %1735 = vmatprep.subr.bf16.mxu0 0
        %1736 = vmatpush1.bf16.msra.mxu0 0
        %1737 = vmatprep.subr.bf16.mxu0 0
        %1738 = vmatpush1.bf16.msra.mxu0 0
        %1739 = vmatprep.subr.bf16.mxu0 0
        %1740 = vmatpush1.bf16.msra.mxu0 0
        %1741 = vmatprep.subr.bf16.mxu0 0
        %1742 = vmatpush1.bf16.msra.mxu0 0
        %1743 = vmatprep.subr.bf16.mxu0 0
        %1744 = vmatpush1.bf16.msra.mxu0 0
        %1745 = vmatprep.subr.bf16.mxu0 0
        %1746 = vmatpush1.bf16.msra.mxu0 0
        %1747 = vmatprep.subr.bf16.mxu0 0
        %1748 = vmatpush1.bf16.msra.mxu0 0
        %1749 = vmatprep.subr.bf16.mxu0 0
        %1750 = vmatpush1.bf16.msra.mxu0 0
        %1751 = vmatprep.mubr.bf16.mxu0 0
        %1752 = vmatmul.mubr.bf16.gmra.mrb[0].mxu0 %v1640
        %v1753 = vpop.f32.mrb[0].mxu0
        %v1754 = vadd.f32 %v1669, %v1753
        %v1755 = vpop.f32.mrb[0].mxu0
        %v1756 = vpop.f32.mrb[0].mxu0
        %v1757 = vadd.f32 %v1669, %v1756
        %v1758 = vpop.f32.mrb[0].mxu0
        %1759 = vmatprep.mubr.bf16.mxu0 0
        %1760 = vmatmul.mubr.bf16.gmra.mrb[0].mxu0 %v1641
        %v1761 = vpop.f32.mrb[0].mxu0
        %v1762 = vadd.f32 %v1669, %v1761
        %v1763 = vpop.f32.mrb[0].mxu0
        %v1764 = vpop.f32.mrb[0].mxu0
        %v1765 = vadd.f32 %v1669, %v1764
        %v1766 = vpop.f32.mrb[0].mxu0
        %1767 = vmatprep.mubr.bf16.mxu0 0
        %1768 = vmatmul.mubr.bf16.gmra.mrb[0].mxu0 %v1642
        %v1769 = vpop.f32.mrb[0].mxu0
        %v1770 = vadd.f32 %v1669, %v1769
        %v1771 = vpop.f32.mrb[0].mxu0
        %v1772 = vpop.f32.mrb[0].mxu0
        %v1773 = vadd.f32 %v1669, %v1772
        %v1774 = vpop.f32.mrb[0].mxu0
        %1775 = vmatprep.mubr.bf16.mxu0 0
        %1776 = vmatmul.mubr.bf16.gmra.mrb[0].mxu0 %v1643
        %v1777 = vpop.f32.mrb[0].mxu0
        %v1778 = vadd.f32 %v1669, %v1777
        %v1779 = vpop.f32.mrb[0].mxu0
        %v1780 = vpop.f32.mrb[0].mxu0
        %v1781 = vadd.f32 %v1669, %v1780
        %v1782 = vpop.f32.mrb[0].mxu0
        %1783 = vmatprep.mubr.bf16.mxu0 0
        %1784 = vmatmul.mubr.bf16.gmra.mrb[0].mxu0 %v1644
        %v1785 = vpop.f32.mrb[0].mxu0
        %v1786 = vadd.f32 %v1669, %v1785
        %v1787 = vpop.f32.mrb[0].mxu0
        %v1788 = vpop.f32.mrb[0].mxu0
        %v1789 = vadd.f32 %v1669, %v1788
        %v1790 = vpop.f32.mrb[0].mxu0
        %1791 = vmatprep.mubr.bf16.mxu0 0
        %1792 = vmatmul.mubr.bf16.gmra.mrb[0].mxu0 %v1645
        %v1793 = vpop.f32.mrb[0].mxu0
        %v1794 = vadd.f32 %v1669, %v1793
        %v1795 = vpop.f32.mrb[0].mxu0
        %v1796 = vpop.f32.mrb[0].mxu0
        %v1797 = vadd.f32 %v1669, %v1796
        %v1798 = vpop.f32.mrb[0].mxu0
        %1799 = vmatprep.mubr.bf16.mxu0 0
        %1800 = vmatmul.mubr.bf16.gmra.mrb[0].mxu0 %v1646
        %v1801 = vpop.f32.mrb[0].mxu0
        %v1802 = vadd.f32 %v1669, %v1801
        %v1803 = vpop.f32.mrb[0].mxu0
        %v1804 = vpop.f32.mrb[0].mxu0
        %v1805 = vadd.f32 %v1669, %v1804
        %v1806 = vpop.f32.mrb[0].mxu0
        %1807 = vmatprep.mubr.bf16.mxu0 0
        %1808 = vmatmul.mubr.bf16.gmra.mrb[0].mxu0 %v1647
        %v1809 = vpop.f32.mrb[0].mxu0
        %v1810 = vadd.f32 %v1669, %v1809
        %v1811 = vpop.f32.mrb[0].mxu0
        %v1812 = vpop.f32.mrb[0].mxu0
        %v1813 = vadd.f32 %v1669, %v1812
        %v1814 = vpop.f32.mrb[0].mxu0
        %1815 = vdwg.mxu0
        %1816 = vst [vmem:[%s408] sm:$0xff] %v1754
        %1817 = vst [vmem:[%s408 + $0x8] sm:$0xff] %v1757
        %1818 = vst [vmem:[%s408 + $0x10] sm:$0xff] %v1762
        %1819 = vst [vmem:[%s408 + $0x18] sm:$0xff] %v1765
        %1820 = vst [vmem:[%s408 + $0x20] sm:$0xff] %v1770
        %1821 = vst [vmem:[%s408 + $0x28] sm:$0xff] %v1773
        %1822 = vst [vmem:[%s408 + $0x30] sm:$0xff] %v1778
        %1823 = vst [vmem:[%s408 + $0x38] sm:$0xff] %v1781
        %1824 = vst [vmem:[%s408 + $0x40] sm:$0xff] %v1786
        %1825 = vst [vmem:[%s408 + $0x48] sm:$0xff] %v1789
        %1826 = vst [vmem:[%s408 + $0x50] sm:$0xff] %v1794
        %1827 = vst [vmem:[%s408 + $0x58] sm:$0xff] %v1797
        %1828 = vst [vmem:[%s408 + $0x60] sm:$0xff] %v1802
        %1829 = vst [vmem:[%s408 + $0x68] sm:$0xff] %v1805
        %1830 = vst [vmem:[%s408 + $0x70] sm:$0xff] %v1810
        %1831 = vst [vmem:[%s408 + $0x78] sm:$0xff] %v1813
        %s1832 = sand.u32 %s230, 1
        %s1833 = scalar_lea.sflag [#allocation4], %s1832
        %s1834 = sand.u32 %s230, 1
        %s1835 = smul.addr %s1834, 128
        %s1836 = scalar_lea.vmem [#allocation11], %s1835
        // Predicated region
        $region77: #{tpu_custom_call.1} parent=55 // pred_check
          %p1837 = pneg %p240
        $region78: #{tpu_custom_call.1} parent=55 // pred_check_branch
          %1839 = sbr.rel (%p1837) target = $region80
        $region79: #{tpu_custom_call.1} parent=55 // pred_region
          %s1840 = smul.u32 16, %s28
          %s1842 = ssub.s32 2048, 2048
          %1843 = vsyncadd %s1833, %s1842
          %s1844 = smul.addr %s1840, 128
          %s1845 = scalar_lea.hbm %s9, %s1844
          %s1846 = sshll.u32 %s1836, 4
          %s1847 = int_to_ptr.vmem [resolvable:$true] %s1846
          %1852 = dma.vmem_to_hbm [thread:$0]  %s1847, 2048, %s1845, %s1833, 128, 128, 8
        $region80: #{tpu_custom_call.1} parent=55 // pred_fallthru
          _
      $region56: #{tpu_custom_call.1} parent=5 // pred_fallthru
        _
      %p1853 = scmp.le.s32.totalorder 2, %s23
      // Predicated region
      $region81: #{tpu_custom_call.1} parent=5 // pred_check
        %p1854 = pneg %p1853
      $region82: #{tpu_custom_call.1} parent=5 // pred_check_branch
        %1856 = sbr.rel (%p1854) target = $region84
      $region83: #{tpu_custom_call.1} parent=5 // pred_region
        %s1857 = ssub.s32 %s23, 2
        // Predicated region
        $region85: #{tpu_custom_call.1} parent=83 // pred_check
          %p1858 = pneg %p246
        $region86: #{tpu_custom_call.1} parent=83 // pred_check_branch
          %1860 = sbr.rel (%p1858) target = $region88
        $region87: #{tpu_custom_call.1} parent=83 // pred_region
          %s1861 = sand.u32 %s231, 1
          %s1862 = scalar_lea.sflag [#allocation4], %s1861
          %s1863 = sand.u32 %s231, 1
          %s1864 = smul.addr %s1863, 128
          %s1865 = scalar_lea.vmem [#allocation11], %s1864
          %1866 = dma.done %s1862, 2048
        $region88: #{tpu_custom_call.1} parent=83 // pred_fallthru
          _
      $region84: #{tpu_custom_call.1} parent=5 // pred_fallthru
        _
    $region6: #{tpu_custom_call.1} parent=1 // loop_footer
      %s27 = sadd.s32 1, %s23
    $region7: #{tpu_custom_call.1} parent=1 // loop_footer_branch
      %22 = sbr.rel target = $region3
    $region8: #{tpu_custom_call.1} parent=1 // loop_exit
      _
    %1867 = vsyncpa [#allocation3], 1
    %s1868 = scalar_lea.sflag [#allocation3], 1
    %1869 = vsyncpa %s1868, 1
    %1870 = vsyncpa [#allocation6], 1
    %1871 = vsyncpa [#allocation9], 1
    %1872 = vsyncpa [#allocation4], 1
    %s1873 = scalar_lea.sflag [#allocation4], 1
    %1874 = vsyncpa %s1873, 1

</llo_original>
